<compile_context>
chip_gen: v7x
topology: tpu7x:2x2x1
jax: 0.10.0
libtpu: 0.0.40
codegen_flags: <defaults>
</compile_context>

<pallas_src>
import math
from functools import partial

import jax
import jax.numpy as jnp
from jax.experimental import pallas as pl
from jax.experimental.pallas import tpu as pltpu


def encoder_kernel(
    x_ref, w_emb_ref, bpe_ref,
    wqkv_ref, bqkv_ref, wo_ref,
    w1_ref, b1_ref, w2_ref,
    vecs_ref,                      # packed [1, 6, D]: bo, b2, g1, be1, g2, be2
    w_dec_ref, b_dec_ref,
    out_ref,
    xs_ref,                        # persistent VMEM scratch: activation [S, D] f32
    *, nhead, d_model, s_valid, eps=1e-5,
):
    l = pl.program_id(0)
    n_layers = pl.num_programs(0)

    H = nhead
    hd = d_model // nhead
    f32, bf16 = jnp.float32, jnp.bfloat16

    def layernorm(y, gamma, beta):
        mu = jnp.mean(y, axis=-1, keepdims=True)
        var = jnp.mean(jnp.square(y - mu), axis=-1, keepdims=True)
        return (y - mu) * jax.lax.rsqrt(var + eps) * gamma + beta

    # ---- layer 0 prologue: embedding + positional encoding (position 0 only,
    #      because PositionalEncoding sees [B, 1, D] and x.size(1) == 1).
    #      bpe == b_emb + pe[0] (folded host-side). ----
    @pl.when(l == 0)
    def _():
        emb = jnp.dot(x_ref[...].astype(bf16), w_emb_ref[...],
                      preferred_element_type=f32) + bpe_ref[...]
        xs_ref[...] = emb
        out_ref[...] = jnp.zeros_like(out_ref)   # never expose stale VMEM

    x = xs_ref[...]                               # [S, D] f32
    S = x.shape[0]

    v = vecs_ref[0]                               # [6, D]
    bo, b2 = v[0:1, :], v[1:2, :]
    g1, be1 = v[2:3, :], v[3:4, :]
    g2, be2 = v[4:5, :], v[5:6, :]

    # ---- multi-head self attention (q = k = v = x), dropout = identity.
    #      1/sqrt(head_dim) already folded into the Q columns of wqkv/bqkv. ----
    qkv = jnp.dot(x.astype(bf16), wqkv_ref[0],
                  preferred_element_type=f32) + bqkv_ref[0]          # [S, 3D]
    q3 = qkv[:, 0 * d_model:1 * d_model].astype(bf16).reshape(S, H, hd)
    k3 = qkv[:, 1 * d_model:2 * d_model].astype(bf16).reshape(S, H, hd)
    v3 = qkv[:, 2 * d_model:3 * d_model].astype(bf16).reshape(S, H, hd)

    s = jnp.einsum('qhd,khd->hqk', q3, k3,
                   preferred_element_type=f32)                        # [H, S, S]
    if s_valid < S:                                                   # mask padded keys
        key_ok = jax.lax.broadcasted_iota(jnp.int32, (1, 1, S), 2) < s_valid
        s = jnp.where(key_ok, s, -1e30)
    s = s - jnp.max(s, axis=-1, keepdims=True)
    p = jnp.exp(s)
    p = p * pl.reciprocal(jnp.sum(p, axis=-1, keepdims=True), approx=True)

    o = jnp.einsum('hqk,khd->qhd', p.astype(bf16), v3,
                   preferred_element_type=f32)                        # [S, H, hd]
    attn = jnp.dot(o.reshape(S, d_model).astype(bf16), wo_ref[0],
                   preferred_element_type=f32) + bo

    x = layernorm(x + attn, g1, be1)              # norm1 (post-norm)

    # ---- feed forward: Linear -> ReLU -> Linear, dropout = identity ----
    hdn = jnp.maximum(
        jnp.dot(x.astype(bf16), w1_ref[0], preferred_element_type=f32) + b1_ref[0],
        0.0)
    ff = jnp.dot(hdn.astype(bf16), w2_ref[0], preferred_element_type=f32) + b2

    x = layernorm(x + ff, g2, be2)                # norm2
    xs_ref[...] = x

    # ---- last layer: mean over singleton dim (identity) + decoder linear ----
    @pl.when(l == n_layers - 1)
    def _():
        out_ref[...] = jnp.dot(x.astype(bf16), w_dec_ref[...],
                               preferred_element_type=f32) + b_dec_ref[...]


def _round_up(n, m):
    return ((n + m - 1) // m) * m


def transformer_net_forward(x, params, *, num_layers, nhead, d_model):
    B, F = x.shape
    C = params["w_dec"].shape[1]
    dff = params["w1"].shape[2]

    S = _round_up(B, 8)        # sublane-pad the sequence(=batch) axis
    Fp = _round_up(F, 128)     # lane-pad input features
    Cp = _round_up(C, 128)     # lane-dense output slab (unmasked vst)

    f32, bf16 = jnp.float32, jnp.bfloat16
    hd = d_model // nhead
    scale = 1.0 / math.sqrt(hd)

    def pad(a, shape):
        out = jnp.zeros(shape, a.dtype)
        return out.at[tuple(slice(0, d) for d in a.shape)].set(a)

    xp    = pad(x.astype(f32), (S, Fp))
    w_emb = pad(params["w_emb"], (Fp, d_model)).astype(bf16)
    bpe   = (params["b_emb"] + params["pe0"]).astype(f32)             # [1, D]

    # Fold the 1/sqrt(head_dim) query scale into the Q third of the fused QKV.
    qscale = jnp.concatenate(
        [jnp.full((1, 1, d_model), scale, f32),
         jnp.ones((1, 1, 2 * d_model), f32)], axis=-1)
    wqkv = (params["wqkv"] * qscale).astype(bf16)                     # [L, D, 3D]
    bqkv = (params["bqkv"] * qscale).astype(f32)                      # [L, 1, 3D]

    wo = params["wo"].astype(bf16)
    w1 = params["w1"].astype(bf16)
    b1 = params["b1"].astype(f32)
    w2 = params["w2"].astype(bf16)

    # Pack the six per-layer d_model-wide vectors into one tensor (fewer DMAs).
    vecs = jnp.concatenate(
        [params["bo"], params["b2"], params["g1"], params["be1"],
         params["g2"], params["be2"]], axis=1).astype(f32)            # [L, 6, D]

    w_dec = pad(params["w_dec"], (d_model, Cp)).astype(bf16)
    b_dec = pad(params["b_dec"], (1, Cp)).astype(f32)

    kernel = partial(encoder_kernel, nhead=nhead, d_model=d_model, s_valid=B)

    grid_spec = pltpu.PrefetchScalarGridSpec(
        num_scalar_prefetch=0,
        grid=(num_layers,),
        in_specs=[
            pl.BlockSpec((S, Fp), lambda l: (0, 0)),                       # x
            pl.BlockSpec((Fp, d_model), lambda l: (0, 0)),                 # w_emb
            pl.BlockSpec((1, d_model), lambda l: (0, 0)),                  # bpe
            pl.BlockSpec((1, d_model, 3 * d_model), lambda l: (l, 0, 0)),  # wqkv
            pl.BlockSpec((1, 1, 3 * d_model), lambda l: (l, 0, 0)),        # bqkv
            pl.BlockSpec((1, d_model, d_model), lambda l: (l, 0, 0)),      # wo
            pl.BlockSpec((1, d_model, dff), lambda l: (l, 0, 0)),          # w1
            pl.BlockSpec((1, 1, dff), lambda l: (l, 0, 0)),                # b1
            pl.BlockSpec((1, dff, d_model), lambda l: (l, 0, 0)),          # w2
            pl.BlockSpec((1, 6, d_model), lambda l: (l, 0, 0)),            # vecs
            pl.BlockSpec((d_model, Cp), lambda l: (0, 0)),                 # w_dec
            pl.BlockSpec((1, Cp), lambda l: (0, 0)),                       # b_dec
        ],
        out_specs=pl.BlockSpec((S, Cp), lambda l: (0, 0)),
        scratch_shapes=[pltpu.VMEM((S, d_model), jnp.float32)],
    )

    out = pl.pallas_call(
        kernel,
        grid_spec=grid_spec,
        out_shape=jax.ShapeDtypeStruct((S, Cp), jnp.float32),
        compiler_params=pltpu.CompilerParams(
            dimension_semantics=("arbitrary",),
            vmem_limit_bytes=48 * 1024 * 1024,
        ),
    )(xp, w_emb, bpe, wqkv, bqkv, wo, w1, b1, w2, vecs, w_dec, b_dec)

    return out[:B, :C]


def init_params(key, *, input_dim, num_classes, d_model, num_layers, dff):
    """Deterministic synthetic parameters (weights pre-transposed to [in, out])."""
    ks = jax.random.split(key, 12)

    def rnd(k, shape):
        return (0.02 * jax.random.normal(k, shape)).astype(jnp.float32)

    L = num_layers
    return {
        "w_emb": rnd(ks[0], (input_dim, d_model)),
        "b_emb": rnd(ks[1], (1, d_model)),
        # sinusoidal PE, position 0: sin(0)=0 on even dims, cos(0)=1 on odd dims
        "pe0": jnp.zeros((1, d_model), jnp.float32).at[:, 1::2].set(1.0),
        "wqkv": rnd(ks[2], (L, d_model, 3 * d_model)),
        "bqkv": rnd(ks[3], (L, 1, 3 * d_model)),
        "wo": rnd(ks[4], (L, d_model, d_model)),
        "bo": rnd(ks[5], (L, 1, d_model)),
        "w1": rnd(ks[6], (L, d_model, dff)),
        "b1": rnd(ks[7], (L, 1, dff)),
        "w2": rnd(ks[8], (L, dff, d_model)),
        "b2": rnd(ks[9], (L, 1, d_model)),
        "g1": jnp.ones((L, 1, d_model), jnp.float32),
        "be1": jnp.zeros((L, 1, d_model), jnp.float32),
        "g2": jnp.ones((L, 1, d_model), jnp.float32),
        "be2": jnp.zeros((L, 1, d_model), jnp.float32),
        "w_dec": rnd(ks[10], (d_model, num_classes)),
        "b_dec": rnd(ks[11], (1, num_classes)),
    }


if __name__ == "__main__":
    # Small shapes consistent with the module's forward (x: [batch, features]),
    # with lane-dense d_model/dff so the MXU contractions are 128-wide.
    # TODO(synk): PyTorch defaults are d_model=256, nhead=8, L=6, dff=2048;
    # scaled down for the small self-test.
    B, F, C = 8, 16, 10
    d_model, nhead, num_layers, dff = 128, 4, 2, 256

    key = jax.random.PRNGKey(0)
    kx, kp = jax.random.split(key)
    x = jax.random.normal(kx, (B, F), dtype=jnp.float32)
    params = init_params(
        kp, input_dim=F, num_classes=C, d_model=d_model,
        num_layers=num_layers, dff=dff,
    )

    out = transformer_net_forward(
        x, params, num_layers=num_layers, nhead=nhead, d_model=d_model
    )
    out = jax.block_until_ready(out)
    assert out.shape == (B, C) and bool(jnp.all(jnp.isfinite(out)))
    print("KERNEL_OK")
</pallas_src>

<mosaic_0001>
module attributes {stable_mosaic.version = 11 : i64} {
  func.func @encoder_kernel(%arg0: i32, %arg1: memref<8x128xf32, #tpu.memory_space<vmem>>, %arg2: memref<128x128xbf16, #tpu.memory_space<vmem>>, %arg3: memref<1x128xf32, #tpu.memory_space<vmem>>, %arg4: memref<1x128x384xbf16, #tpu.memory_space<vmem>>, %arg5: memref<1x1x384xf32, #tpu.memory_space<vmem>>, %arg6: memref<1x128x128xbf16, #tpu.memory_space<vmem>>, %arg7: memref<1x128x256xbf16, #tpu.memory_space<vmem>>, %arg8: memref<1x1x256xf32, #tpu.memory_space<vmem>>, %arg9: memref<1x256x128xbf16, #tpu.memory_space<vmem>>, %arg10: memref<1x6x128xf32, #tpu.memory_space<vmem>>, %arg11: memref<128x128xbf16, #tpu.memory_space<vmem>>, %arg12: memref<1x128xf32, #tpu.memory_space<vmem>>, %arg13: memref<8x128xf32, #tpu.memory_space<vmem>>, %arg14: memref<8x128xf32, #tpu.memory_space<vmem>>) attributes {dimension_semantics = [#tpu.dimension_semantics<arbitrary>], iteration_bounds = array<i64: 2>, scalar_prefetch = 0 : i64, scratch_operands = 1 : i64, tpu.core_type = #tpu.core_type<tc>, window_params = [{pipeline_mode = #tpu.pipeline_mode<synchronous>, transform_indices = @transform_0, window_bounds = array<i64: 8, 128>}, {pipeline_mode = #tpu.pipeline_mode<synchronous>, transform_indices = @transform_1, window_bounds = array<i64: 128, 128>}, {pipeline_mode = #tpu.pipeline_mode<synchronous>, transform_indices = @transform_2, window_bounds = array<i64: 1, 128>}, {transform_indices = @transform_3, window_bounds = array<i64: 1, 128, 384>}, {transform_indices = @transform_4, window_bounds = array<i64: 1, 1, 384>}, {transform_indices = @transform_5, window_bounds = array<i64: 1, 128, 128>}, {transform_indices = @transform_6, window_bounds = array<i64: 1, 128, 256>}, {transform_indices = @transform_7, window_bounds = array<i64: 1, 1, 256>}, {transform_indices = @transform_8, window_bounds = array<i64: 1, 256, 128>}, {transform_indices = @transform_9, window_bounds = array<i64: 1, 6, 128>}, {pipeline_mode = #tpu.pipeline_mode<synchronous>, transform_indices = @transform_10, window_bounds = array<i64: 128, 128>}, {pipeline_mode = #tpu.pipeline_mode<synchronous>, transform_indices = @transform_11, window_bounds = array<i64: 1, 128>}, {pipeline_mode = #tpu.pipeline_mode<synchronous>, transform_indices = @transform_12, window_bounds = array<i64: 8, 128>}]} {
    %c0_i32 = arith.constant 0 : i32
    %0 = arith.cmpi eq, %arg0, %c0_i32 : i32
    %1 = arith.extui %0 : i1 to i32
    %c0_i32_0 = arith.constant 0 : i32
    %2 = arith.cmpi ne, %1, %c0_i32_0 : i32
    scf.if %2 {
      %c0_44 = arith.constant 0 : index
      %c0_45 = arith.constant 0 : index
      %116 = vector.load %arg1[%c0_44, %c0_45] : memref<8x128xf32, #tpu.memory_space<vmem>>, vector<8x128xf32>
      %117 = arith.truncf %116 : vector<8x128xf32> to vector<8x128xbf16>
      %c0_46 = arith.constant 0 : index
      %c0_47 = arith.constant 0 : index
      %118 = vector.load %arg2[%c0_46, %c0_47] : memref<128x128xbf16, #tpu.memory_space<vmem>>, vector<128x128xbf16>
      %cst_48 = arith.constant dense<0.000000e+00> : vector<8x128xf32>
      %119 = tpu.matmul %117, %118, %cst_48 {dimension_numbers = #tpu.dot_dimension_numbers<[1], [0], [0], [1], [0, 0, 1, 1], [], []>} : vector<8x128xbf16>, vector<128x128xbf16>, vector<8x128xf32> -> vector<8x128xf32>
      %c0_49 = arith.constant 0 : index
      %c0_50 = arith.constant 0 : index
      %120 = vector.load %arg3[%c0_49, %c0_50] : memref<1x128xf32, #tpu.memory_space<vmem>>, vector<1x128xf32>
      %121 = vector.broadcast %120 : vector<1x128xf32> to vector<8x128xf32>
      %122 = arith.addf %119, %121 : vector<8x128xf32>
      %c0_51 = arith.constant 0 : index
      %c0_52 = arith.constant 0 : index
      %123 = vector.load %arg14[%c0_51, %c0_52] : memref<8x128xf32, #tpu.memory_space<vmem>>, vector<8x128xf32>
      tpu.vector_store %arg14[%c0_51, %c0_52], %122 {strides = array<i32>} : memref<8x128xf32, #tpu.memory_space<vmem>>, vector<8x128xf32>,
      %cst_53 = arith.constant 0.000000e+00 : f32
      %124 = vector.broadcast %cst_53 : f32 to vector<8x128xf32>
      %c0_54 = arith.constant 0 : index
      %c0_55 = arith.constant 0 : index
      %125 = vector.load %arg13[%c0_54, %c0_55] : memref<8x128xf32, #tpu.memory_space<vmem>>, vector<8x128xf32>
      tpu.vector_store %arg13[%c0_54, %c0_55], %124 {strides = array<i32>} : memref<8x128xf32, #tpu.memory_space<vmem>>, vector<8x128xf32>,
    } else {
    }
    %c0 = arith.constant 0 : index
    %c0_1 = arith.constant 0 : index
    %3 = vector.load %arg14[%c0, %c0_1] : memref<8x128xf32, #tpu.memory_space<vmem>>, vector<8x128xf32>
    %c0_2 = arith.constant 0 : index
    %c0_3 = arith.constant 0 : index
    %c0_4 = arith.constant 0 : index
    %4 = vector.load %arg10[%c0_2, %c0_3, %c0_4] : memref<1x6x128xf32, #tpu.memory_space<vmem>>, vector<1x6x128xf32>
    %5 = vector.shape_cast %4 : vector<1x6x128xf32> to vector<6x128xf32>
    %6 = vector.extract_strided_slice %5 {offsets = [0, 0], sizes = [1, 128], strides = [1, 1]} : vector<6x128xf32> to vector<1x128xf32>
    %7 = vector.extract_strided_slice %5 {offsets = [1, 0], sizes = [1, 128], strides = [1, 1]} : vector<6x128xf32> to vector<1x128xf32>
    %8 = vector.extract_strided_slice %5 {offsets = [2, 0], sizes = [1, 128], strides = [1, 1]} : vector<6x128xf32> to vector<1x128xf32>
    %9 = vector.extract_strided_slice %5 {offsets = [3, 0], sizes = [1, 128], strides = [1, 1]} : vector<6x128xf32> to vector<1x128xf32>
    %10 = vector.extract_strided_slice %5 {offsets = [4, 0], sizes = [1, 128], strides = [1, 1]} : vector<6x128xf32> to vector<1x128xf32>
    %11 = vector.extract_strided_slice %5 {offsets = [5, 0], sizes = [1, 128], strides = [1, 1]} : vector<6x128xf32> to vector<1x128xf32>
    %12 = arith.truncf %3 : vector<8x128xf32> to vector<8x128xbf16>
    %c0_5 = arith.constant 0 : index
    %c0_6 = arith.constant 0 : index
    %c0_7 = arith.constant 0 : index
    %13 = vector.load %arg4[%c0_5, %c0_6, %c0_7] : memref<1x128x384xbf16, #tpu.memory_space<vmem>>, vector<1x128x384xbf16>
    %14 = vector.shape_cast %13 : vector<1x128x384xbf16> to vector<128x384xbf16>
    %cst = arith.constant dense<0.000000e+00> : vector<8x384xf32>
    %15 = tpu.matmul %12, %14, %cst {dimension_numbers = #tpu.dot_dimension_numbers<[1], [0], [0], [1], [0, 0, 1, 1], [], []>} : vector<8x128xbf16>, vector<128x384xbf16>, vector<8x384xf32> -> vector<8x384xf32>
    %c0_8 = arith.constant 0 : index
    %c0_9 = arith.constant 0 : index
    %c0_10 = arith.constant 0 : index
    %16 = vector.load %arg5[%c0_8, %c0_9, %c0_10] : memref<1x1x384xf32, #tpu.memory_space<vmem>>, vector<1x1x384xf32>
    %17 = vector.shape_cast %16 : vector<1x1x384xf32> to vector<1x384xf32>
    %18 = vector.broadcast %17 : vector<1x384xf32> to vector<8x384xf32>
    %19 = arith.addf %15, %18 : vector<8x384xf32>
    %20 = vector.extract_strided_slice %19 {offsets = [0, 0], sizes = [8, 128], strides = [1, 1]} : vector<8x384xf32> to vector<8x128xf32>
    %21 = arith.truncf %20 : vector<8x128xf32> to vector<8x128xbf16>
    %22 = vector.shape_cast %21 : vector<8x128xbf16> to vector<8x4x32xbf16>
    %23 = vector.extract_strided_slice %19 {offsets = [0, 128], sizes = [8, 128], strides = [1, 1]} : vector<8x384xf32> to vector<8x128xf32>
    %24 = arith.truncf %23 : vector<8x128xf32> to vector<8x128xbf16>
    %25 = vector.shape_cast %24 : vector<8x128xbf16> to vector<8x4x32xbf16>
    %26 = vector.extract_strided_slice %19 {offsets = [0, 256], sizes = [8, 128], strides = [1, 1]} : vector<8x384xf32> to vector<8x128xf32>
    %27 = arith.truncf %26 : vector<8x128xf32> to vector<8x128xbf16>
    %28 = vector.shape_cast %27 : vector<8x128xbf16> to vector<8x4x32xbf16>
    "tpu.trace_start"() <{level = 10 : i32, message = "qhd,khd->hqk"}> : () -> ()
    %cst_11 = arith.constant dense<0.000000e+00> : vector<4x8x8xf32>
    %29 = tpu.matmul %22, %25, %cst_11 {dimension_numbers = #tpu.dot_dimension_numbers<[2], [2], [0], [0], [0, 1, 0, 0, 1, 0], [1], [1]>} : vector<8x4x32xbf16>, vector<8x4x32xbf16>, vector<4x8x8xf32> -> vector<4x8x8xf32>
    "tpu.trace_stop"() : () -> ()
    %cst_12 = arith.constant dense<0xFF800000> : vector<4x8xf32>
    %30 = vector.multi_reduction <maximumf>, %29, %cst_12 [2] : vector<4x8x8xf32> to vector<4x8xf32>
    %31 = vector.shape_cast %30 : vector<4x8xf32> to vector<4x8x1xf32>
    %32 = vector.broadcast %31 : vector<4x8x1xf32> to vector<4x8x8xf32>
    %33 = arith.subf %29, %32 : vector<4x8x8xf32>
    %34 = math.exp %33 : vector<4x8x8xf32>
    %cst_13 = arith.constant dense<0.000000e+00> : vector<4x8xf32>
    %35 = vector.multi_reduction <add>, %34, %cst_13 [2] : vector<4x8x8xf32> to vector<4x8xf32>
    %36 = vector.shape_cast %35 : vector<4x8xf32> to vector<4x8x1xf32>
    %37 = tpu.reciprocal %36 {approx = true} : vector<4x8x1xf32> -> vector<4x8x1xf32>
    %38 = vector.broadcast %37 : vector<4x8x1xf32> to vector<4x8x8xf32>
    %39 = arith.mulf %34, %38 : vector<4x8x8xf32>
    %40 = arith.truncf %39 : vector<4x8x8xf32> to vector<4x8x8xbf16>
    "tpu.trace_start"() <{level = 10 : i32, message = "hqk,khd->qhd"}> : () -> ()
    %cst_14 = arith.constant dense<0.000000e+00> : vector<4x32x8xf32>
    %41 = tpu.matmul %28, %40, %cst_14 {dimension_numbers = #tpu.dot_dimension_numbers<[0], [2], [2], [1], [0, 1, 0, 2, 1, 1], [1], [0]>} : vector<8x4x32xbf16>, vector<4x8x8xbf16>, vector<4x32x8xf32> -> vector<4x32x8xf32>
    %42 = tpu.transpose %41, [2, 0, 1] : vector<4x32x8xf32> -> vector<8x4x32xf32>
    "tpu.trace_stop"() : () -> ()
    %43 = vector.shape_cast %42 : vector<8x4x32xf32> to vector<8x128xf32>
    %44 = arith.truncf %43 : vector<8x128xf32> to vector<8x128xbf16>
    %c0_15 = arith.constant 0 : index
    %c0_16 = arith.constant 0 : index
    %c0_17 = arith.constant 0 : index
    %45 = vector.load %arg6[%c0_15, %c0_16, %c0_17] : memref<1x128x128xbf16, #tpu.memory_space<vmem>>, vector<1x128x128xbf16>
    %46 = vector.shape_cast %45 : vector<1x128x128xbf16> to vector<128x128xbf16>
    %cst_18 = arith.constant dense<0.000000e+00> : vector<8x128xf32>
    %47 = tpu.matmul %44, %46, %cst_18 {dimension_numbers = #tpu.dot_dimension_numbers<[1], [0], [0], [1], [0, 0, 1, 1], [], []>} : vector<8x128xbf16>, vector<128x128xbf16>, vector<8x128xf32> -> vector<8x128xf32>
    %48 = vector.broadcast %6 : vector<1x128xf32> to vector<8x128xf32>
    %49 = arith.addf %47, %48 : vector<8x128xf32>
    %50 = arith.addf %3, %49 : vector<8x128xf32>
    %cst_19 = arith.constant dense<0.000000e+00> : vector<8xf32>
    %51 = vector.multi_reduction <add>, %50, %cst_19 [1] : vector<8x128xf32> to vector<8xf32>
    %52 = vector.shape_cast %51 : vector<8xf32> to vector<8x1xf32>
    %cst_20 = arith.constant 1.280000e+02 : f32
    %53 = vector.broadcast %cst_20 : f32 to vector<8x1xf32>
    %54 = arith.divf %52, %53 : vector<8x1xf32>
    %55 = vector.broadcast %54 : vector<8x1xf32> to vector<8x128xf32>
    %56 = arith.subf %50, %55 : vector<8x128xf32>
    %57 = arith.mulf %56, %56 : vector<8x128xf32>
    %cst_21 = arith.constant dense<0.000000e+00> : vector<8xf32>
    %58 = vector.multi_reduction <add>, %57, %cst_21 [1] : vector<8x128xf32> to vector<8xf32>
    %59 = vector.shape_cast %58 : vector<8xf32> to vector<8x1xf32>
    %cst_22 = arith.constant 1.280000e+02 : f32
    %60 = vector.broadcast %cst_22 : f32 to vector<8x1xf32>
    %61 = arith.divf %59, %60 : vector<8x1xf32>
    %62 = vector.broadcast %54 : vector<8x1xf32> to vector<8x128xf32>
    %63 = arith.subf %50, %62 : vector<8x128xf32>
    %cst_23 = arith.constant 9.99999974E-6 : f32
    %64 = vector.broadcast %cst_23 : f32 to vector<8x1xf32>
    %65 = arith.addf %61, %64 : vector<8x1xf32>
    %66 = math.rsqrt %65 : vector<8x1xf32>
    %67 = vector.broadcast %66 : vector<8x1xf32> to vector<8x128xf32>
    %68 = arith.mulf %63, %67 : vector<8x128xf32>
    %69 = vector.broadcast %8 : vector<1x128xf32> to vector<8x128xf32>
    %70 = arith.mulf %68, %69 : vector<8x128xf32>
    %71 = vector.broadcast %9 : vector<1x128xf32> to vector<8x128xf32>
    %72 = arith.addf %70, %71 : vector<8x128xf32>
    %73 = arith.truncf %72 : vector<8x128xf32> to vector<8x128xbf16>
    %c0_24 = arith.constant 0 : index
    %c0_25 = arith.constant 0 : index
    %c0_26 = arith.constant 0 : index
    %74 = vector.load %arg7[%c0_24, %c0_25, %c0_26] : memref<1x128x256xbf16, #tpu.memory_space<vmem>>, vector<1x128x256xbf16>
    %75 = vector.shape_cast %74 : vector<1x128x256xbf16> to vector<128x256xbf16>
    %cst_27 = arith.constant dense<0.000000e+00> : vector<8x256xf32>
    %76 = tpu.matmul %73, %75, %cst_27 {dimension_numbers = #tpu.dot_dimension_numbers<[1], [0], [0], [1], [0, 0, 1, 1], [], []>} : vector<8x128xbf16>, vector<128x256xbf16>, vector<8x256xf32> -> vector<8x256xf32>
    %c0_28 = arith.constant 0 : index
    %c0_29 = arith.constant 0 : index
    %c0_30 = arith.constant 0 : index
    %77 = vector.load %arg8[%c0_28, %c0_29, %c0_30] : memref<1x1x256xf32, #tpu.memory_space<vmem>>, vector<1x1x256xf32>
    %78 = vector.shape_cast %77 : vector<1x1x256xf32> to vector<1x256xf32>
    %79 = vector.broadcast %78 : vector<1x256xf32> to vector<8x256xf32>
    %80 = arith.addf %76, %79 : vector<8x256xf32>
    %cst_31 = arith.constant 0.000000e+00 : f32
    %81 = vector.broadcast %cst_31 : f32 to vector<8x256xf32>
    %82 = arith.maximumf %80, %81 : vector<8x256xf32>
    %83 = arith.truncf %82 : vector<8x256xf32> to vector<8x256xbf16>
    %c0_32 = arith.constant 0 : index
    %c0_33 = arith.constant 0 : index
    %c0_34 = arith.constant 0 : index
    %84 = vector.load %arg9[%c0_32, %c0_33, %c0_34] : memref<1x256x128xbf16, #tpu.memory_space<vmem>>, vector<1x256x128xbf16>
    %85 = vector.shape_cast %84 : vector<1x256x128xbf16> to vector<256x128xbf16>
    %cst_35 = arith.constant dense<0.000000e+00> : vector<8x128xf32>
    %86 = tpu.matmul %83, %85, %cst_35 {dimension_numbers = #tpu.dot_dimension_numbers<[1], [0], [0], [1], [0, 0, 1, 1], [], []>} : vector<8x256xbf16>, vector<256x128xbf16>, vector<8x128xf32> -> vector<8x128xf32>
    %87 = vector.broadcast %7 : vector<1x128xf32> to vector<8x128xf32>
    %88 = arith.addf %86, %87 : vector<8x128xf32>
    %89 = arith.addf %72, %88 : vector<8x128xf32>
    %cst_36 = arith.constant dense<0.000000e+00> : vector<8xf32>
    %90 = vector.multi_reduction <add>, %89, %cst_36 [1] : vector<8x128xf32> to vector<8xf32>
    %91 = vector.shape_cast %90 : vector<8xf32> to vector<8x1xf32>
    %cst_37 = arith.constant 1.280000e+02 : f32
    %92 = vector.broadcast %cst_37 : f32 to vector<8x1xf32>
    %93 = arith.divf %91, %92 : vector<8x1xf32>
    %94 = vector.broadcast %93 : vector<8x1xf32> to vector<8x128xf32>
    %95 = arith.subf %89, %94 : vector<8x128xf32>
    %96 = arith.mulf %95, %95 : vector<8x128xf32>
    %cst_38 = arith.constant dense<0.000000e+00> : vector<8xf32>
    %97 = vector.multi_reduction <add>, %96, %cst_38 [1] : vector<8x128xf32> to vector<8xf32>
    %98 = vector.shape_cast %97 : vector<8xf32> to vector<8x1xf32>
    %cst_39 = arith.constant 1.280000e+02 : f32
    %99 = vector.broadcast %cst_39 : f32 to vector<8x1xf32>
    %100 = arith.divf %98, %99 : vector<8x1xf32>
    %101 = vector.broadcast %93 : vector<8x1xf32> to vector<8x128xf32>
    %102 = arith.subf %89, %101 : vector<8x128xf32>
    %cst_40 = arith.constant 9.99999974E-6 : f32
    %103 = vector.broadcast %cst_40 : f32 to vector<8x1xf32>
    %104 = arith.addf %100, %103 : vector<8x1xf32>
    %105 = math.rsqrt %104 : vector<8x1xf32>
    %106 = vector.broadcast %105 : vector<8x1xf32> to vector<8x128xf32>
    %107 = arith.mulf %102, %106 : vector<8x128xf32>
    %108 = vector.broadcast %10 : vector<1x128xf32> to vector<8x128xf32>
    %109 = arith.mulf %107, %108 : vector<8x128xf32>
    %110 = vector.broadcast %11 : vector<1x128xf32> to vector<8x128xf32>
    %111 = arith.addf %109, %110 : vector<8x128xf32>
    %c0_41 = arith.constant 0 : index
    %c0_42 = arith.constant 0 : index
    %112 = vector.load %arg14[%c0_41, %c0_42] : memref<8x128xf32, #tpu.memory_space<vmem>>, vector<8x128xf32>
    tpu.vector_store %arg14[%c0_41, %c0_42], %111 {strides = array<i32>} : memref<8x128xf32, #tpu.memory_space<vmem>>, vector<8x128xf32>,
    %c1_i32 = arith.constant 1 : i32
    %113 = arith.cmpi eq, %arg0, %c1_i32 : i32
    %114 = arith.extui %113 : i1 to i32
    %c0_i32_43 = arith.constant 0 : i32
    %115 = arith.cmpi ne, %114, %c0_i32_43 : i32
    scf.if %115 {
      %116 = arith.truncf %111 : vector<8x128xf32> to vector<8x128xbf16>
      %c0_44 = arith.constant 0 : index
      %c0_45 = arith.constant 0 : index
      %117 = vector.load %arg11[%c0_44, %c0_45] : memref<128x128xbf16, #tpu.memory_space<vmem>>, vector<128x128xbf16>
      %cst_46 = arith.constant dense<0.000000e+00> : vector<8x128xf32>
      %118 = tpu.matmul %116, %117, %cst_46 {dimension_numbers = #tpu.dot_dimension_numbers<[1], [0], [0], [1], [0, 0, 1, 1], [], []>} : vector<8x128xbf16>, vector<128x128xbf16>, vector<8x128xf32> -> vector<8x128xf32>
      %c0_47 = arith.constant 0 : index
      %c0_48 = arith.constant 0 : index
      %119 = vector.load %arg12[%c0_47, %c0_48] : memref<1x128xf32, #tpu.memory_space<vmem>>, vector<1x128xf32>
      %120 = vector.broadcast %119 : vector<1x128xf32> to vector<8x128xf32>
      %121 = arith.addf %118, %120 : vector<8x128xf32>
      %c0_49 = arith.constant 0 : index
      %c0_50 = arith.constant 0 : index
      %122 = vector.load %arg13[%c0_49, %c0_50] : memref<8x128xf32, #tpu.memory_space<vmem>>, vector<8x128xf32>
      tpu.vector_store %arg13[%c0_49, %c0_50], %121 {strides = array<i32>} : memref<8x128xf32, #tpu.memory_space<vmem>>, vector<8x128xf32>,
    } else {
    }
    return
  }
  func.func @transform_0(%arg0: i32) -> (i32, i32) {
    %c0_i32 = arith.constant 0 : i32
    %c0_i32_0 = arith.constant 0 : i32
    %c0_i32_1 = arith.constant 0 : i32
    return %c0_i32, %c0_i32_0 : i32, i32
  }
  func.func @transform_1(%arg0: i32) -> (i32, i32) {
    %c0_i32 = arith.constant 0 : i32
    %c0_i32_0 = arith.constant 0 : i32
    %c0_i32_1 = arith.constant 0 : i32
    return %c0_i32, %c0_i32_0 : i32, i32
  }
  func.func @transform_2(%arg0: i32) -> (i32, i32) {
    %c0_i32 = arith.constant 0 : i32
    %c0_i32_0 = arith.constant 0 : i32
    %c0_i32_1 = arith.constant 0 : i32
    return %c0_i32, %c0_i32_0 : i32, i32
  }
  func.func @transform_3(%arg0: i32) -> (i32, i32, i32) {
    %c0_i32 = arith.constant 0 : i32
    %c0_i32_0 = arith.constant 0 : i32
    %c0_i32_1 = arith.constant 0 : i32
    return %arg0, %c0_i32, %c0_i32_0 : i32, i32, i32
  }
  func.func @transform_4(%arg0: i32) -> (i32, i32, i32) {
    %c0_i32 = arith.constant 0 : i32
    %c0_i32_0 = arith.constant 0 : i32
    %c0_i32_1 = arith.constant 0 : i32
    return %arg0, %c0_i32, %c0_i32_0 : i32, i32, i32
  }
  func.func @transform_5(%arg0: i32) -> (i32, i32, i32) {
    %c0_i32 = arith.constant 0 : i32
    %c0_i32_0 = arith.constant 0 : i32
    %c0_i32_1 = arith.constant 0 : i32
    return %arg0, %c0_i32, %c0_i32_0 : i32, i32, i32
  }
  func.func @transform_6(%arg0: i32) -> (i32, i32, i32) {
    %c0_i32 = arith.constant 0 : i32
    %c0_i32_0 = arith.constant 0 : i32
    %c0_i32_1 = arith.constant 0 : i32
    return %arg0, %c0_i32, %c0_i32_0 : i32, i32, i32
  }
  func.func @transform_7(%arg0: i32) -> (i32, i32, i32) {
    %c0_i32 = arith.constant 0 : i32
    %c0_i32_0 = arith.constant 0 : i32
    %c0_i32_1 = arith.constant 0 : i32
    return %arg0, %c0_i32, %c0_i32_0 : i32, i32, i32
  }
  func.func @transform_8(%arg0: i32) -> (i32, i32, i32) {
    %c0_i32 = arith.constant 0 : i32
    %c0_i32_0 = arith.constant 0 : i32
    %c0_i32_1 = arith.constant 0 : i32
    return %arg0, %c0_i32, %c0_i32_0 : i32, i32, i32
  }
  func.func @transform_9(%arg0: i32) -> (i32, i32, i32) {
    %c0_i32 = arith.constant 0 : i32
    %c0_i32_0 = arith.constant 0 : i32
    %c0_i32_1 = arith.constant 0 : i32
    return %arg0, %c0_i32, %c0_i32_0 : i32, i32, i32
  }
  func.func @transform_10(%arg0: i32) -> (i32, i32) {
    %c0_i32 = arith.constant 0 : i32
    %c0_i32_0 = arith.constant 0 : i32
    %c0_i32_1 = arith.constant 0 : i32
    return %c0_i32, %c0_i32_0 : i32, i32
  }
  func.func @transform_11(%arg0: i32) -> (i32, i32) {
    %c0_i32 = arith.constant 0 : i32
    %c0_i32_0 = arith.constant 0 : i32
    %c0_i32_1 = arith.constant 0 : i32
    return %c0_i32, %c0_i32_0 : i32, i32
  }
  func.func @transform_12(%arg0: i32) -> (i32, i32) {
    %c0_i32 = arith.constant 0 : i32
    %c0_i32_0 = arith.constant 0 : i32
    %c0_i32_1 = arith.constant 0 : i32
    return %c0_i32, %c0_i32_0 : i32, i32
  }
}

</mosaic_0001>

<llo_original>
// kernel: tpu_custom_call.1
$region0: #{tpu_custom_call.1}
  #allocation0 [shape = 'u32[]', space=smem, size = 0x4, offset = 0x4, fixed_abs, tag = 'smem constant byte address 0x4 - core index']
  #allocation1 [shape = 'u32[144,128]{1,0:T(1,128)}', space=vmem, size = 0x12000, scoped, tag = 'internal scratch']
  #allocation2 [shape = 'f32[8,128]{1,0:T(8,128)}', space=vmem, size = 0x1000, scoped, tag = 'scratch operand']
  %s0 = inlined_call_operand.hbm [shape: f32[8,128], index: 0, kind: input, shape index: {}]
  %s1 = inlined_call_operand.hbm [shape: bf16[128,128], index: 1, kind: input, shape index: {}]
  %s2 = inlined_call_operand.vmem [shape: f32[1,128], index: 2, kind: input, shape index: {}]
  %s3 = inlined_call_operand.hbm [shape: bf16[2,128,384], index: 3, kind: input, shape index: {}]
  %s4 = inlined_call_operand.hbm [shape: f32[2,1,384], index: 4, kind: input, shape index: {}]
  %s5 = inlined_call_operand.hbm [shape: bf16[2,128,128], index: 5, kind: input, shape index: {}]
  %s6 = inlined_call_operand.hbm [shape: bf16[2,128,256], index: 6, kind: input, shape index: {}]
  %s7 = inlined_call_operand.hbm [shape: f32[2,1,256], index: 7, kind: input, shape index: {}]
  %s8 = inlined_call_operand.hbm [shape: bf16[2,256,128], index: 8, kind: input, shape index: {}]
  %s9 = inlined_call_operand.vmem [shape: f32[2,6,128], index: 9, kind: input, shape index: {}]
  %s10 = inlined_call_operand.vmem [shape: bf16[128,128], index: 10, kind: input, shape index: {}]
  %s11 = inlined_call_operand.vmem [shape: f32[1,128], index: 11, kind: input, shape index: {}]
  %s12 = inlined_call_operand.hbm [shape: f32[8,128], index: 12, kind: output, shape index: {}]
  %s13 = sld [smem:[#allocation0]]
  $region121: #{tpu_custom_call.1} parent=0
    _
  %s15 = ssub.s32 1, %s13
  %s16 = scalar_select 0, %s15, %s13
  $region1: #{tpu_custom_call.1} parent=0
    #allocation3 [shape = 'u8[4096]{0}', space=vmem, size = 0x1000, scoped, tag = 'input window, operand 0, single buffered']
    #allocation4 [shape = 's32[2]{0}', space=sflag, size = 0x8, scoped, tag = 'scoped memory for tpu_custom_call.1']
    #allocation5 [shape = 's32[2]{0}', space=sflag, size = 0x8, scoped, tag = 'scoped memory for tpu_custom_call.1']
    #allocation6 [shape = 'u8[32768]{0}', space=vmem, size = 0x8000, scoped, tag = 'input window, operand 1, single buffered']
    #allocation7 [shape = 's32[1]{0}', space=sflag, size = 0x4, scoped, tag = 'scoped memory for tpu_custom_call.1']
    #allocation8 [shape = 'u8[196608]{0}', space=vmem, size = 0x30000, scoped, tag = 'input window, operand 3']
    #allocation9 [shape = 'u8[3072]{0}', space=vmem, size = 0xc00, scoped, tag = 'input window, operand 4']
    #allocation10 [shape = 'u8[65536]{0}', space=vmem, size = 0x10000, scoped, tag = 'input window, operand 5']
    #allocation11 [shape = 'u8[131072]{0}', space=vmem, size = 0x20000, scoped, tag = 'input window, operand 6']
    #allocation12 [shape = 'u8[2048]{0}', space=vmem, size = 0x800, scoped, tag = 'input window, operand 7']
    #allocation13 [shape = 'u8[131072]{0}', space=vmem, size = 0x20000, scoped, tag = 'input window, operand 8']
    #allocation14 [shape = 'u8[4096]{0}', space=vmem, size = 0x1000, scoped, tag = 'output window, operand 0, single buffered']
    %17 = vsyncpa [#allocation4], 0
    %18 = vsyncpa [#allocation7], 0
    %19 = vsyncpa [#allocation5], 0
    loop: start=0, step=1, limit=4
    $region2: #{tpu_custom_call.1} parent=1 // loop_pre_header
      _
    $region3: #{tpu_custom_call.1} parent=1 // loop_header
      %s21 = sphi 0, %s25
      %p22 = scmp.ge.s32.totalorder %s21, 4
      %s29 = sphi 0, %s29
      %s31 = sphi 0, %s29
      %s32 = sphi 0, %s31
      %s46 = sphi 0, %s32
      %s50 = sphi 0, %s50
      %s52 = sphi 0, %s50
      %s53 = sphi 0, %s52
      %s67 = sphi 0, %s53
      %s71 = sphi 0, %s71
      %s73 = sphi 0, %s71
      %s74 = sphi 0, %s73
      %s88 = sphi 0, %s74
      %s94 = sphi 0, %s96
      %s97 = sphi 0, %s94
      %s98 = sphi 0, %s97
      %s114 = sphi 0, %s98
      %s120 = sphi 0, %s122
      %s123 = sphi 0, %s120
      %s124 = sphi 0, %s123
      %s140 = sphi 0, %s124
      %s146 = sphi 0, %s148
      %s149 = sphi 0, %s146
      %s150 = sphi 0, %s149
      %s166 = sphi 0, %s150
      %s172 = sphi 0, %s174
      %s175 = sphi 0, %s172
      %s176 = sphi 0, %s175
      %s192 = sphi 0, %s176
      %s198 = sphi 0, %s200
      %s201 = sphi 0, %s198
      %s202 = sphi 0, %s201
      %s218 = sphi 0, %s202
      %s224 = sphi 0, %s226
      %s227 = sphi 0, %s224
      %s228 = sphi 0, %s227
      %s244 = sphi 0, %s228
      %s250 = sphi 0, %s252
      %s253 = sphi 0, %s250
      %s254 = sphi 0, %s253
      %s270 = sphi 0, %s254
      %s274 = sphi 0, %s274
      %s276 = sphi 0, %s274
      %s277 = sphi 0, %s276
      %s291 = sphi 0, %s277
      %s295 = sphi 0, %s295
      %s297 = sphi 0, %s295
      %s298 = sphi 0, %s297
      %s312 = sphi 0, %s298
      %s316 = sphi 0, %s316
      %s318 = sphi 0, %s316
      %s319 = sphi 0, %s318
      %s333 = sphi 0, %s319
    $region4: #{tpu_custom_call.1} parent=1 // loop_header_branch
      %24 = sbr.rel (%p22) target = $region8
    $region5: #{tpu_custom_call.1} parent=1 // loop_body
      %s26 = ssub.s32 %s21, 1
      %s27 = ssub.s32 %s21, 2
      %s28 = sadd.s32 %s21, 1
      %s30 = sadd.s32 %s29, 1
      %p33 = scmp.eq.s32.totalorder %s21, 1
      %p34 = scmp.ne.s32.totalorder %s29, %s31
      %p35 = scmp.eq.s32.totalorder %s21, 0
      %p36 = por %p34, %p35
      %p37 = scmp.ne.s32.totalorder %s29, %s31
      %p38 = scmp.eq.s32.totalorder %s26, 1
      %p39 = por %p37, %p38
      %p40 = scmp.ne.s32.totalorder %s31, %s32
      %p41 = scmp.eq.s32.totalorder %s26, 0
      %p42 = por %p40, %p41
      %p43 = scmp.ne.s32.totalorder %s31, %s32
      %p44 = scmp.eq.s32.totalorder %s27, 1
      %p45 = por %p43, %p44
      %p47 = scmp.ne.s32.totalorder %s32, %s46
      %p48 = scmp.eq.s32.totalorder %s27, 0
      %p49 = por %p47, %p48
      %s51 = sadd.s32 %s50, 1
      %p54 = scmp.eq.s32.totalorder %s21, 1
      %p55 = scmp.ne.s32.totalorder %s50, %s52
      %p56 = scmp.eq.s32.totalorder %s21, 0
      %p57 = por %p55, %p56
      %p58 = scmp.ne.s32.totalorder %s50, %s52
      %p59 = scmp.eq.s32.totalorder %s26, 1
      %p60 = por %p58, %p59
      %p61 = scmp.ne.s32.totalorder %s52, %s53
      %p62 = scmp.eq.s32.totalorder %s26, 0
      %p63 = por %p61, %p62
      %p64 = scmp.ne.s32.totalorder %s52, %s53
      %p65 = scmp.eq.s32.totalorder %s27, 1
      %p66 = por %p64, %p65
      %p68 = scmp.ne.s32.totalorder %s53, %s67
      %p69 = scmp.eq.s32.totalorder %s27, 0
      %p70 = por %p68, %p69
      %s72 = sadd.s32 %s71, 1
      %p75 = scmp.eq.s32.totalorder %s21, 1
      %p76 = scmp.ne.s32.totalorder %s71, %s73
      %p77 = scmp.eq.s32.totalorder %s21, 0
      %p78 = por %p76, %p77
      %p79 = scmp.ne.s32.totalorder %s71, %s73
      %p80 = scmp.eq.s32.totalorder %s26, 1
      %p81 = por %p79, %p80
      %p82 = scmp.ne.s32.totalorder %s73, %s74
      %p83 = scmp.eq.s32.totalorder %s26, 0
      %p84 = por %p82, %p83
      %p85 = scmp.ne.s32.totalorder %s73, %s74
      %p86 = scmp.eq.s32.totalorder %s27, 1
      %p87 = por %p85, %p86
      %p89 = scmp.ne.s32.totalorder %s74, %s88
      %p90 = scmp.eq.s32.totalorder %s27, 0
      %p91 = por %p89, %p90
      %s92 = ssub.s32 %s21, %s28
      %p93 = scmp.eq.s32.totalorder %s92, 0
      %s95 = sadd.s32 %s94, 1
      %s96 = scalar_select %p93, %s94, %s95
      %p99 = pneg %p93
      %p100 = scmp.eq.s32.totalorder %s21, 1
      %p101 = por %p99, %p100
      %p102 = scmp.ne.s32.totalorder %s94, %s97
      %p103 = scmp.eq.s32.totalorder %s21, 0
      %p104 = por %p102, %p103
      %p105 = scmp.ne.s32.totalorder %s94, %s97
      %p106 = scmp.eq.s32.totalorder %s26, 1
      %p107 = por %p105, %p106
      %p108 = scmp.ne.s32.totalorder %s97, %s98
      %p109 = scmp.eq.s32.totalorder %s26, 0
      %p110 = por %p108, %p109
      %p111 = scmp.ne.s32.totalorder %s97, %s98
      %p112 = scmp.eq.s32.totalorder %s27, 1
      %p113 = por %p111, %p112
      %p115 = scmp.ne.s32.totalorder %s98, %s114
      %p116 = scmp.eq.s32.totalorder %s27, 0
      %p117 = por %p115, %p116
      %s118 = ssub.s32 %s21, %s28
      %p119 = scmp.eq.s32.totalorder %s118, 0
      %s121 = sadd.s32 %s120, 1
      %s122 = scalar_select %p119, %s120, %s121
      %p125 = pneg %p119
      %p126 = scmp.eq.s32.totalorder %s21, 1
      %p127 = por %p125, %p126
      %p128 = scmp.ne.s32.totalorder %s120, %s123
      %p129 = scmp.eq.s32.totalorder %s21, 0
      %p130 = por %p128, %p129
      %p131 = scmp.ne.s32.totalorder %s120, %s123
      %p132 = scmp.eq.s32.totalorder %s26, 1
      %p133 = por %p131, %p132
      %p134 = scmp.ne.s32.totalorder %s123, %s124
      %p135 = scmp.eq.s32.totalorder %s26, 0
      %p136 = por %p134, %p135
      %p137 = scmp.ne.s32.totalorder %s123, %s124
      %p138 = scmp.eq.s32.totalorder %s27, 1
      %p139 = por %p137, %p138
      %p141 = scmp.ne.s32.totalorder %s124, %s140
      %p142 = scmp.eq.s32.totalorder %s27, 0
      %p143 = por %p141, %p142
      %s144 = ssub.s32 %s21, %s28
      %p145 = scmp.eq.s32.totalorder %s144, 0
      %s147 = sadd.s32 %s146, 1
      %s148 = scalar_select %p145, %s146, %s147
      %p151 = pneg %p145
      %p152 = scmp.eq.s32.totalorder %s21, 1
      %p153 = por %p151, %p152
      %p154 = scmp.ne.s32.totalorder %s146, %s149
      %p155 = scmp.eq.s32.totalorder %s21, 0
      %p156 = por %p154, %p155
      %p157 = scmp.ne.s32.totalorder %s146, %s149
      %p158 = scmp.eq.s32.totalorder %s26, 1
      %p159 = por %p157, %p158
      %p160 = scmp.ne.s32.totalorder %s149, %s150
      %p161 = scmp.eq.s32.totalorder %s26, 0
      %p162 = por %p160, %p161
      %p163 = scmp.ne.s32.totalorder %s149, %s150
      %p164 = scmp.eq.s32.totalorder %s27, 1
      %p165 = por %p163, %p164
      %p167 = scmp.ne.s32.totalorder %s150, %s166
      %p168 = scmp.eq.s32.totalorder %s27, 0
      %p169 = por %p167, %p168
      %s170 = ssub.s32 %s21, %s28
      %p171 = scmp.eq.s32.totalorder %s170, 0
      %s173 = sadd.s32 %s172, 1
      %s174 = scalar_select %p171, %s172, %s173
      %p177 = pneg %p171
      %p178 = scmp.eq.s32.totalorder %s21, 1
      %p179 = por %p177, %p178
      %p180 = scmp.ne.s32.totalorder %s172, %s175
      %p181 = scmp.eq.s32.totalorder %s21, 0
      %p182 = por %p180, %p181
      %p183 = scmp.ne.s32.totalorder %s172, %s175
      %p184 = scmp.eq.s32.totalorder %s26, 1
      %p185 = por %p183, %p184
      %p186 = scmp.ne.s32.totalorder %s175, %s176
      %p187 = scmp.eq.s32.totalorder %s26, 0
      %p188 = por %p186, %p187
      %p189 = scmp.ne.s32.totalorder %s175, %s176
      %p190 = scmp.eq.s32.totalorder %s27, 1
      %p191 = por %p189, %p190
      %p193 = scmp.ne.s32.totalorder %s176, %s192
      %p194 = scmp.eq.s32.totalorder %s27, 0
      %p195 = por %p193, %p194
      %s196 = ssub.s32 %s21, %s28
      %p197 = scmp.eq.s32.totalorder %s196, 0
      %s199 = sadd.s32 %s198, 1
      %s200 = scalar_select %p197, %s198, %s199
      %p203 = pneg %p197
      %p204 = scmp.eq.s32.totalorder %s21, 1
      %p205 = por %p203, %p204
      %p206 = scmp.ne.s32.totalorder %s198, %s201
      %p207 = scmp.eq.s32.totalorder %s21, 0
      %p208 = por %p206, %p207
      %p209 = scmp.ne.s32.totalorder %s198, %s201
      %p210 = scmp.eq.s32.totalorder %s26, 1
      %p211 = por %p209, %p210
      %p212 = scmp.ne.s32.totalorder %s201, %s202
      %p213 = scmp.eq.s32.totalorder %s26, 0
      %p214 = por %p212, %p213
      %p215 = scmp.ne.s32.totalorder %s201, %s202
      %p216 = scmp.eq.s32.totalorder %s27, 1
      %p217 = por %p215, %p216
      %p219 = scmp.ne.s32.totalorder %s202, %s218
      %p220 = scmp.eq.s32.totalorder %s27, 0
      %p221 = por %p219, %p220
      %s222 = ssub.s32 %s21, %s28
      %p223 = scmp.eq.s32.totalorder %s222, 0
      %s225 = sadd.s32 %s224, 1
      %s226 = scalar_select %p223, %s224, %s225
      %p229 = pneg %p223
      %p230 = scmp.eq.s32.totalorder %s21, 1
      %p231 = por %p229, %p230
      %p232 = scmp.ne.s32.totalorder %s224, %s227
      %p233 = scmp.eq.s32.totalorder %s21, 0
      %p234 = por %p232, %p233
      %p235 = scmp.ne.s32.totalorder %s224, %s227
      %p236 = scmp.eq.s32.totalorder %s26, 1
      %p237 = por %p235, %p236
      %p238 = scmp.ne.s32.totalorder %s227, %s228
      %p239 = scmp.eq.s32.totalorder %s26, 0
      %p240 = por %p238, %p239
      %p241 = scmp.ne.s32.totalorder %s227, %s228
      %p242 = scmp.eq.s32.totalorder %s27, 1
      %p243 = por %p241, %p242
      %p245 = scmp.ne.s32.totalorder %s228, %s244
      %p246 = scmp.eq.s32.totalorder %s27, 0
      %p247 = por %p245, %p246
      %s248 = ssub.s32 %s21, %s28
      %p249 = scmp.eq.s32.totalorder %s248, 0
      %s251 = sadd.s32 %s250, 1
      %s252 = scalar_select %p249, %s250, %s251
      %p255 = pneg %p249
      %p256 = scmp.eq.s32.totalorder %s21, 1
      %p257 = por %p255, %p256
      %p258 = scmp.ne.s32.totalorder %s250, %s253
      %p259 = scmp.eq.s32.totalorder %s21, 0
      %p260 = por %p258, %p259
      %p261 = scmp.ne.s32.totalorder %s250, %s253
      %p262 = scmp.eq.s32.totalorder %s26, 1
      %p263 = por %p261, %p262
      %p264 = scmp.ne.s32.totalorder %s253, %s254
      %p265 = scmp.eq.s32.totalorder %s26, 0
      %p266 = por %p264, %p265
      %p267 = scmp.ne.s32.totalorder %s253, %s254
      %p268 = scmp.eq.s32.totalorder %s27, 1
      %p269 = por %p267, %p268
      %p271 = scmp.ne.s32.totalorder %s254, %s270
      %p272 = scmp.eq.s32.totalorder %s27, 0
      %p273 = por %p271, %p272
      %s275 = sadd.s32 %s274, 1
      %p278 = scmp.eq.s32.totalorder %s21, 1
      %p279 = scmp.ne.s32.totalorder %s274, %s276
      %p280 = scmp.eq.s32.totalorder %s21, 0
      %p281 = por %p279, %p280
      %p282 = scmp.ne.s32.totalorder %s274, %s276
      %p283 = scmp.eq.s32.totalorder %s26, 1
      %p284 = por %p282, %p283
      %p285 = scmp.ne.s32.totalorder %s276, %s277
      %p286 = scmp.eq.s32.totalorder %s26, 0
      %p287 = por %p285, %p286
      %p288 = scmp.ne.s32.totalorder %s276, %s277
      %p289 = scmp.eq.s32.totalorder %s27, 1
      %p290 = por %p288, %p289
      %p292 = scmp.ne.s32.totalorder %s277, %s291
      %p293 = scmp.eq.s32.totalorder %s27, 0
      %p294 = por %p292, %p293
      %s296 = sadd.s32 %s295, 1
      %p299 = scmp.eq.s32.totalorder %s21, 1
      %p300 = scmp.ne.s32.totalorder %s295, %s297
      %p301 = scmp.eq.s32.totalorder %s21, 0
      %p302 = por %p300, %p301
      %p303 = scmp.ne.s32.totalorder %s295, %s297
      %p304 = scmp.eq.s32.totalorder %s26, 1
      %p305 = por %p303, %p304
      %p306 = scmp.ne.s32.totalorder %s297, %s298
      %p307 = scmp.eq.s32.totalorder %s26, 0
      %p308 = por %p306, %p307
      %p309 = scmp.ne.s32.totalorder %s297, %s298
      %p310 = scmp.eq.s32.totalorder %s27, 1
      %p311 = por %p309, %p310
      %p313 = scmp.ne.s32.totalorder %s298, %s312
      %p314 = scmp.eq.s32.totalorder %s27, 0
      %p315 = por %p313, %p314
      %s317 = sadd.s32 %s316, 1
      %p320 = scmp.eq.s32.totalorder %s21, 1
      %p321 = scmp.ne.s32.totalorder %s316, %s318
      %p322 = scmp.eq.s32.totalorder %s21, 0
      %p323 = por %p321, %p322
      %p324 = scmp.ne.s32.totalorder %s316, %s318
      %p325 = scmp.eq.s32.totalorder %s26, 1
      %p326 = por %p324, %p325
      %p327 = scmp.ne.s32.totalorder %s318, %s319
      %p328 = scmp.eq.s32.totalorder %s26, 0
      %p329 = por %p327, %p328
      %p330 = scmp.ne.s32.totalorder %s318, %s319
      %p331 = scmp.eq.s32.totalorder %s27, 1
      %p332 = por %p330, %p331
      %p334 = scmp.ne.s32.totalorder %s319, %s333
      %p335 = scmp.eq.s32.totalorder %s27, 0
      %p336 = por %p334, %p335
      %p337 = scmp.le.s32.totalorder 1, %s21
      %p338 = scmp.lt.s32.totalorder %s21, 3
      %p339 = pnand %p337, %p338
      %p340 = pneg %p339
      // Predicated region
      $region9: #{tpu_custom_call.1} parent=5 // pred_check
        _
      $region10: #{tpu_custom_call.1} parent=5 // pred_check_branch
        %342 = sbr.rel (%p339) target = $region12
      $region11: #{tpu_custom_call.1} parent=5 // pred_region
        %s343 = ssub.s32 %s21, 1
        // Predicated region
        $region13: #{tpu_custom_call.1} parent=11 // pred_check
          %p344 = pneg %p42
        $region14: #{tpu_custom_call.1} parent=11 // pred_check_branch
          %346 = sbr.rel (%p344) target = $region16
        $region15: #{tpu_custom_call.1} parent=11 // pred_region
          %s348 = ssub.s32 128, 128
          %349 = vsyncadd [#allocation4], %s348
          %s351 = sshll.u32 [#allocation3], 4
          %s352 = int_to_ptr.vmem [resolvable:$true] %s351
          %354 = dma.hbm_to_vmem [thread:$0]  %s0, 128, %s352, [#allocation4]
        $region16: #{tpu_custom_call.1} parent=11 // pred_fallthru
          _
        // Predicated region
        $region17: #{tpu_custom_call.1} parent=11 // pred_check
          %p355 = pneg %p63
        $region18: #{tpu_custom_call.1} parent=11 // pred_check_branch
          %357 = sbr.rel (%p355) target = $region20
        $region19: #{tpu_custom_call.1} parent=11 // pred_region
          %s359 = ssub.s32 1024, 1024
          %360 = vsyncadd [#allocation7], %s359
          %s361 = sshll.u32 [#allocation6], 4
          %s362 = int_to_ptr.vmem [resolvable:$true] %s361
          %367 = dma.hbm_to_vmem [thread:$0]  %s1, 1024, %s362, [#allocation7], 64, 64, 4
        $region20: #{tpu_custom_call.1} parent=11 // pred_fallthru
          _
        // Predicated region
        $region21: #{tpu_custom_call.1} parent=11 // pred_check
          %p368 = pneg %p84
        $region22: #{tpu_custom_call.1} parent=11 // pred_check_branch
          %370 = sbr.rel (%p368) target = $region24
        $region23: #{tpu_custom_call.1} parent=11 // pred_region
          _
        $region24: #{tpu_custom_call.1} parent=11 // pred_fallthru
          _
        // Predicated region
        $region25: #{tpu_custom_call.1} parent=11 // pred_check
          %p371 = pneg %p287
        $region26: #{tpu_custom_call.1} parent=11 // pred_check_branch
          %373 = sbr.rel (%p371) target = $region28
        $region27: #{tpu_custom_call.1} parent=11 // pred_region
          _
        $region28: #{tpu_custom_call.1} parent=11 // pred_fallthru
          _
        // Predicated region
        $region29: #{tpu_custom_call.1} parent=11 // pred_check
          %p374 = pneg %p308
        $region30: #{tpu_custom_call.1} parent=11 // pred_check_branch
          %376 = sbr.rel (%p374) target = $region32
        $region31: #{tpu_custom_call.1} parent=11 // pred_region
          _
        $region32: #{tpu_custom_call.1} parent=11 // pred_fallthru
          _
      $region12: #{tpu_custom_call.1} parent=5 // pred_fallthru
        _
      %p377 = scmp.lt.s32.totalorder %s21, 2
      // Predicated region
      $region33: #{tpu_custom_call.1} parent=5 // pred_check
        %p378 = pneg %p377
      $region34: #{tpu_custom_call.1} parent=5 // pred_check_branch
        %380 = sbr.rel (%p378) target = $region36
      $region35: #{tpu_custom_call.1} parent=5 // pred_region
        // Predicated region
        $region37: #{tpu_custom_call.1} parent=35 // pred_check
          %p381 = pneg %p104
        $region38: #{tpu_custom_call.1} parent=35 // pred_check_branch
          %383 = sbr.rel (%p381) target = $region40
        $region39: #{tpu_custom_call.1} parent=35 // pred_region
          %s384 = sand.u32 %s21, 1
          %s385 = scalar_lea.sflag [#allocation4], %s384
          %s386 = sand.u32 %s94, 1
          %s387 = smul.addr %s386, 192
          %s388 = scalar_lea.vmem [#allocation8], %s387
          %s390 = ssub.s32 3072, 3072
          %391 = vsyncadd %s385, %s390
          %s392 = smul.addr %s21, 48
          %s393 = smul.addr %s392, 64
          %s394 = scalar_lea.hbm %s3, %s393
          %s395 = sshll.u32 %s388, 4
          %s396 = int_to_ptr.vmem [resolvable:$true] %s395
          %401 = dma.hbm_to_vmem [thread:$0]  %s394, 3072, %s396, %s385, 192, 192, 12
        $region40: #{tpu_custom_call.1} parent=35 // pred_fallthru
          _
        // Predicated region
        $region41: #{tpu_custom_call.1} parent=35 // pred_check
          %p402 = pneg %p130
        $region42: #{tpu_custom_call.1} parent=35 // pred_check_branch
          %404 = sbr.rel (%p402) target = $region44
        $region43: #{tpu_custom_call.1} parent=35 // pred_region
          %s405 = sand.u32 %s21, 1
          %s406 = scalar_lea.sflag [#allocation4], %s405
          %s407 = sand.u32 %s120, 1
          %s408 = smul.addr %s407, 3
          %s409 = scalar_lea.vmem [#allocation9], %s408
          %s411 = ssub.s32 48, 48
          %412 = vsyncadd %s406, %s411
          %s413 = smul.addr %s21, 3
          %s414 = smul.addr %s413, 16
          %s415 = scalar_lea.hbm %s4, %s414
          %s417 = sshll.u32 %s409, 4
          %s418 = int_to_ptr.vmem [resolvable:$true] %s417
          %420 = dma.hbm_to_vmem [thread:$0]  %s415, 48, %s418, %s406
        $region44: #{tpu_custom_call.1} parent=35 // pred_fallthru
          _
        // Predicated region
        $region45: #{tpu_custom_call.1} parent=35 // pred_check
          %p421 = pneg %p156
        $region46: #{tpu_custom_call.1} parent=35 // pred_check_branch
          %423 = sbr.rel (%p421) target = $region48
        $region47: #{tpu_custom_call.1} parent=35 // pred_region
          %s424 = sand.u32 %s21, 1
          %s425 = scalar_lea.sflag [#allocation4], %s424
          %s426 = sand.u32 %s146, 1
          %s427 = smul.addr %s426, 64
          %s428 = scalar_lea.vmem [#allocation10], %s427
          %s430 = ssub.s32 1024, 1024
          %431 = vsyncadd %s425, %s430
          %s432 = smul.addr %s21, 16
          %s433 = smul.addr %s432, 64
          %s434 = scalar_lea.hbm %s5, %s433
          %s435 = sshll.u32 %s428, 4
          %s436 = int_to_ptr.vmem [resolvable:$true] %s435
          %441 = dma.hbm_to_vmem [thread:$0]  %s434, 1024, %s436, %s425, 64, 64, 4
        $region48: #{tpu_custom_call.1} parent=35 // pred_fallthru
          _
        // Predicated region
        $region49: #{tpu_custom_call.1} parent=35 // pred_check
          %p442 = pneg %p182
        $region50: #{tpu_custom_call.1} parent=35 // pred_check_branch
          %444 = sbr.rel (%p442) target = $region52
        $region51: #{tpu_custom_call.1} parent=35 // pred_region
          %s445 = sand.u32 %s21, 1
          %s446 = scalar_lea.sflag [#allocation4], %s445
          %s447 = sand.u32 %s172, 1
          %s448 = smul.addr %s447, 128
          %s449 = scalar_lea.vmem [#allocation11], %s448
          %s451 = ssub.s32 2048, 2048
          %452 = vsyncadd %s446, %s451
          %s453 = smul.addr %s21, 32
          %s454 = smul.addr %s453, 64
          %s455 = scalar_lea.hbm %s6, %s454
          %s456 = sshll.u32 %s449, 4
          %s457 = int_to_ptr.vmem [resolvable:$true] %s456
          %462 = dma.hbm_to_vmem [thread:$0]  %s455, 2048, %s457, %s446, 128, 128, 8
        $region52: #{tpu_custom_call.1} parent=35 // pred_fallthru
          _
        // Predicated region
        $region53: #{tpu_custom_call.1} parent=35 // pred_check
          %p463 = pneg %p208
        $region54: #{tpu_custom_call.1} parent=35 // pred_check_branch
          %465 = sbr.rel (%p463) target = $region56
        $region55: #{tpu_custom_call.1} parent=35 // pred_region
          %s466 = sand.u32 %s21, 1
          %s467 = scalar_lea.sflag [#allocation4], %s466
          %s468 = sand.u32 %s198, 1
          %s469 = smul.addr %s468, 2
          %s470 = scalar_lea.vmem [#allocation12], %s469
          %s472 = ssub.s32 32, 32
          %473 = vsyncadd %s467, %s472
          %s474 = smul.addr %s21, 2
          %s475 = smul.addr %s474, 16
          %s476 = scalar_lea.hbm %s7, %s475
          %s478 = sshll.u32 %s470, 4
          %s479 = int_to_ptr.vmem [resolvable:$true] %s478
          %481 = dma.hbm_to_vmem [thread:$0]  %s476, 32, %s479, %s467
        $region56: #{tpu_custom_call.1} parent=35 // pred_fallthru
          _
        // Predicated region
        $region57: #{tpu_custom_call.1} parent=35 // pred_check
          %p482 = pneg %p234
        $region58: #{tpu_custom_call.1} parent=35 // pred_check_branch
          %484 = sbr.rel (%p482) target = $region60
        $region59: #{tpu_custom_call.1} parent=35 // pred_region
          %s485 = sand.u32 %s21, 1
          %s486 = scalar_lea.sflag [#allocation4], %s485
          %s487 = sand.u32 %s224, 1
          %s488 = smul.addr %s487, 128
          %s489 = scalar_lea.vmem [#allocation13], %s488
          %s491 = ssub.s32 2048, 2048
          %492 = vsyncadd %s486, %s491
          %s493 = smul.addr %s21, 32
          %s494 = smul.addr %s493, 64
          %s495 = scalar_lea.hbm %s8, %s494
          %s496 = sshll.u32 %s489, 4
          %s497 = int_to_ptr.vmem [resolvable:$true] %s496
          %502 = dma.hbm_to_vmem [thread:$0]  %s495, 2048, %s497, %s486, 64, 64, 4
        $region60: #{tpu_custom_call.1} parent=35 // pred_fallthru
          _
        // Predicated region
        $region61: #{tpu_custom_call.1} parent=35 // pred_check
          %p503 = pneg %p260
        $region62: #{tpu_custom_call.1} parent=35 // pred_check_branch
          %505 = sbr.rel (%p503) target = $region64
        $region63: #{tpu_custom_call.1} parent=35 // pred_region
          %p506 = scmp.lt.s32.totalorder %s21, 1
          %s507 = scalar_select %p506, %s21, 1
          %s508 = smul.addr %s507, 8
          %s509 = scalar_lea.vmem %s9, %s508
        $region64: #{tpu_custom_call.1} parent=35 // pred_fallthru
          _
      $region36: #{tpu_custom_call.1} parent=5 // pred_fallthru
        _
      %p510 = scmp.le.s32.totalorder 1, %s21
      %p511 = scmp.lt.s32.totalorder %s21, 3
      %p512 = pnand %p510, %p511
      %p513 = pneg %p512
      // Predicated region
      $region65: #{tpu_custom_call.1} parent=5 // pred_check
        _
      $region66: #{tpu_custom_call.1} parent=5 // pred_check_branch
        %515 = sbr.rel (%p512) target = $region68
      $region67: #{tpu_custom_call.1} parent=5 // pred_region
        %s516 = ssub.s32 %s21, 1
        // Predicated region
        $region69: #{tpu_custom_call.1} parent=67 // pred_check
          %p517 = pneg %p42
        $region70: #{tpu_custom_call.1} parent=67 // pred_check_branch
          %519 = sbr.rel (%p517) target = $region72
        $region71: #{tpu_custom_call.1} parent=67 // pred_region
          %520 = dma.done [#allocation4], 128
        $region72: #{tpu_custom_call.1} parent=67 // pred_fallthru
          _
        // Predicated region
        $region73: #{tpu_custom_call.1} parent=67 // pred_check
          %p521 = pneg %p63
        $region74: #{tpu_custom_call.1} parent=67 // pred_check_branch
          %523 = sbr.rel (%p521) target = $region76
        $region75: #{tpu_custom_call.1} parent=67 // pred_region
          %524 = dma.done [#allocation7], 1024
        $region76: #{tpu_custom_call.1} parent=67 // pred_fallthru
          _
        %s525 = sand.u32 %s26, 1
        %s526 = scalar_lea.sflag [#allocation4], %s525
        %s527 = sand.u32 %s97, 1
        %s528 = smul.addr %s527, 192
        %s529 = scalar_lea.vmem [#allocation8], %s528
        // Predicated region
        $region77: #{tpu_custom_call.1} parent=67 // pred_check
          %p530 = pneg %p110
        $region78: #{tpu_custom_call.1} parent=67 // pred_check_branch
          %532 = sbr.rel (%p530) target = $region80
        $region79: #{tpu_custom_call.1} parent=67 // pred_region
          %533 = dma.done %s526, 3072
        $region80: #{tpu_custom_call.1} parent=67 // pred_fallthru
          _
        %s534 = sand.u32 %s26, 1
        %s535 = scalar_lea.sflag [#allocation4], %s534
        %s536 = sand.u32 %s123, 1
        %s537 = smul.addr %s536, 3
        %s538 = scalar_lea.vmem [#allocation9], %s537
        // Predicated region
        $region81: #{tpu_custom_call.1} parent=67 // pred_check
          %p539 = pneg %p136
        $region82: #{tpu_custom_call.1} parent=67 // pred_check_branch
          %541 = sbr.rel (%p539) target = $region84
        $region83: #{tpu_custom_call.1} parent=67 // pred_region
          %542 = dma.done %s535, 48
        $region84: #{tpu_custom_call.1} parent=67 // pred_fallthru
          _
        %s543 = sand.u32 %s26, 1
        %s544 = scalar_lea.sflag [#allocation4], %s543
        %s545 = sand.u32 %s149, 1
        %s546 = smul.addr %s545, 64
        %s547 = scalar_lea.vmem [#allocation10], %s546
        // Predicated region
        $region85: #{tpu_custom_call.1} parent=67 // pred_check
          %p548 = pneg %p162
        $region86: #{tpu_custom_call.1} parent=67 // pred_check_branch
          %550 = sbr.rel (%p548) target = $region88
        $region87: #{tpu_custom_call.1} parent=67 // pred_region
          %551 = dma.done %s544, 1024
        $region88: #{tpu_custom_call.1} parent=67 // pred_fallthru
          _
        %s552 = sand.u32 %s26, 1
        %s553 = scalar_lea.sflag [#allocation4], %s552
        %s554 = sand.u32 %s175, 1
        %s555 = smul.addr %s554, 128
        %s556 = scalar_lea.vmem [#allocation11], %s555
        // Predicated region
        $region89: #{tpu_custom_call.1} parent=67 // pred_check
          %p557 = pneg %p188
        $region90: #{tpu_custom_call.1} parent=67 // pred_check_branch
          %559 = sbr.rel (%p557) target = $region92
        $region91: #{tpu_custom_call.1} parent=67 // pred_region
          %560 = dma.done %s553, 2048
        $region92: #{tpu_custom_call.1} parent=67 // pred_fallthru
          _
        %s561 = sand.u32 %s26, 1
        %s562 = scalar_lea.sflag [#allocation4], %s561
        %s563 = sand.u32 %s201, 1
        %s564 = smul.addr %s563, 2
        %s565 = scalar_lea.vmem [#allocation12], %s564
        // Predicated region
        $region93: #{tpu_custom_call.1} parent=67 // pred_check
          %p566 = pneg %p214
        $region94: #{tpu_custom_call.1} parent=67 // pred_check_branch
          %568 = sbr.rel (%p566) target = $region96
        $region95: #{tpu_custom_call.1} parent=67 // pred_region
          %569 = dma.done %s562, 32
        $region96: #{tpu_custom_call.1} parent=67 // pred_fallthru
          _
        %s570 = sand.u32 %s26, 1
        %s571 = scalar_lea.sflag [#allocation4], %s570
        %s572 = sand.u32 %s227, 1
        %s573 = smul.addr %s572, 128
        %s574 = scalar_lea.vmem [#allocation13], %s573
        // Predicated region
        $region97: #{tpu_custom_call.1} parent=67 // pred_check
          %p575 = pneg %p240
        $region98: #{tpu_custom_call.1} parent=67 // pred_check_branch
          %577 = sbr.rel (%p575) target = $region100
        $region99: #{tpu_custom_call.1} parent=67 // pred_region
          %578 = dma.done %s571, 2048
        $region100: #{tpu_custom_call.1} parent=67 // pred_fallthru
          _
        %p579 = pneg %p42
        %p580 = pneg %p39
        %p581 = pneg %p63
        %p582 = pneg %p60
        %p583 = pneg %p84
        %p584 = pneg %p81
        %s585 = sand.u32 %s26, 1
        %s586 = scalar_lea.sflag [#allocation4], %s585
        %s587 = sand.u32 %s97, 1
        %s588 = smul.addr %s587, 192
        %s589 = scalar_lea.vmem [#allocation8], %s588
        %p590 = pneg %p110
        %p591 = pneg %p107
        %s592 = sand.u32 %s26, 1
        %s593 = scalar_lea.sflag [#allocation4], %s592
        %s594 = sand.u32 %s123, 1
        %s595 = smul.addr %s594, 3
        %s596 = scalar_lea.vmem [#allocation9], %s595
        %p597 = pneg %p136
        %p598 = pneg %p133
        %s599 = sand.u32 %s26, 1
        %s600 = scalar_lea.sflag [#allocation4], %s599
        %s601 = sand.u32 %s149, 1
        %s602 = smul.addr %s601, 64
        %s603 = scalar_lea.vmem [#allocation10], %s602
        %p604 = pneg %p162
        %p605 = pneg %p159
        %s606 = sand.u32 %s26, 1
        %s607 = scalar_lea.sflag [#allocation4], %s606
        %s608 = sand.u32 %s175, 1
        %s609 = smul.addr %s608, 128
        %s610 = scalar_lea.vmem [#allocation11], %s609
        %p611 = pneg %p188
        %p612 = pneg %p185
        %s613 = sand.u32 %s26, 1
        %s614 = scalar_lea.sflag [#allocation4], %s613
        %s615 = sand.u32 %s201, 1
        %s616 = smul.addr %s615, 2
        %s617 = scalar_lea.vmem [#allocation12], %s616
        %p618 = pneg %p214
        %p619 = pneg %p211
        %s620 = sand.u32 %s26, 1
        %s621 = scalar_lea.sflag [#allocation4], %s620
        %s622 = sand.u32 %s227, 1
        %s623 = smul.addr %s622, 128
        %s624 = scalar_lea.vmem [#allocation13], %s623
        %p625 = pneg %p240
        %p626 = pneg %p237
        %p627 = scmp.lt.s32.totalorder %s26, 1
        %s628 = scalar_select %p627, %s26, 1
        %s629 = smul.addr %s628, 8
        %s630 = scalar_lea.vmem %s9, %s629
        %p631 = pneg %p266
        %p632 = pneg %p263
        %p633 = pneg %p287
        %p634 = pneg %p284
        %p635 = pneg %p308
        %p636 = pneg %p305
        %p637 = pneg %p329
        %p638 = pneg %p326
        %p639 = scmp.lt.s32.totalorder %s26, 1
        %s640 = scalar_select %p639, %s26, 1
        %s641 = smul.addr %s640, 8
        %s642 = scalar_lea.vmem %s9, %s641
        %p644 = scmp.eq.s32.totalorder %s26, 0
        // Predicated region
        $region101: #{tpu_custom_call.1} parent=67 // pred_check
          %p645 = pneg %p644
        $region102: #{tpu_custom_call.1} parent=67 // pred_check_branch
          %647 = sbr.rel (%p645) target = $region104
        $region103: #{tpu_custom_call.1} parent=67 // pred_region
          %v648 = vld [vmem:[#allocation3] sm:$0xff]
          %v649 = vpack.c.bf16 %v648, %v648
          %v650 = vld [vmem:[#allocation6] sm:$0xf]
          %v651 = vld [vmem:[#allocation6 + $0x4] sm:$0xf]
          %v652 = vld [vmem:[#allocation6 + $0x8] sm:$0xf]
          %v653 = vld [vmem:[#allocation6 + $0xc] sm:$0xf]
          %v654 = vld [vmem:[#allocation6 + $0x10] sm:$0xf]
          %v655 = vld [vmem:[#allocation6 + $0x14] sm:$0xf]
          %v656 = vld [vmem:[#allocation6 + $0x18] sm:$0xf]
          %v657 = vld [vmem:[#allocation6 + $0x1c] sm:$0xf]
          %v658 = vld [vmem:[#allocation6 + $0x20] sm:$0xf]
          %v659 = vld [vmem:[#allocation6 + $0x24] sm:$0xf]
          %v660 = vld [vmem:[#allocation6 + $0x28] sm:$0xf]
          %v661 = vld [vmem:[#allocation6 + $0x2c] sm:$0xf]
          %v662 = vld [vmem:[#allocation6 + $0x30] sm:$0xf]
          %v663 = vld [vmem:[#allocation6 + $0x34] sm:$0xf]
          %v664 = vld [vmem:[#allocation6 + $0x38] sm:$0xf]
          %v665 = vld [vmem:[#allocation6 + $0x3c] sm:$0xf]
          %v666 = vld [vmem:[%s2] sm:$0x1]
          %v668 = vlaneseq
          %v669 = vshrl.u32 %v668, 7
          %v670 = vsub.s32 0, %v669
          %v671 = vrot.slane %v666, %v670
          %v689 = vunpack.c.l.b16 %v650
          %v690 = vunpack.c.l.b16 %v651
          %v691 = vunpack.c.l.b16 %v652
          %v692 = vunpack.c.l.b16 %v653
          %v693 = vunpack.c.l.b16 %v654
          %v694 = vunpack.c.l.b16 %v655
          %v695 = vunpack.c.l.b16 %v656
          %v696 = vunpack.c.l.b16 %v657
          %v697 = vunpack.c.l.b16 %v658
          %v698 = vunpack.c.l.b16 %v659
          %v699 = vunpack.c.l.b16 %v660
          %v700 = vunpack.c.l.b16 %v661
          %v701 = vunpack.c.l.b16 %v662
          %v702 = vunpack.c.l.b16 %v663
          %v703 = vunpack.c.l.b16 %v664
          %v704 = vunpack.c.l.b16 %v665
          %v705 = vpack.c.b16 %v690, %v689
          %v706 = vpack.c.b16 %v692, %v691
          %v707 = vpack.c.b16 %v694, %v693
          %v708 = vpack.c.b16 %v696, %v695
          %v709 = vpack.c.b16 %v698, %v697
          %v710 = vpack.c.b16 %v700, %v699
          %v711 = vpack.c.b16 %v702, %v701
          %v712 = vpack.c.b16 %v704, %v703
          %721 = vmatprep.subr.bf16.mxu0 0
          %722 = vmatpush1.bf16.msra.mxu0 %v705
          %723 = vmatprep.subr.bf16.mxu0 0
          %724 = vmatpush1.bf16.msra.mxu0 %v706
          %725 = vmatprep.subr.bf16.mxu0 0
          %726 = vmatpush1.bf16.msra.mxu0 %v707
          %727 = vmatprep.subr.bf16.mxu0 0
          %728 = vmatpush1.bf16.msra.mxu0 %v708
          %729 = vmatprep.subr.bf16.mxu0 0
          %730 = vmatpush1.bf16.msra.mxu0 %v709
          %731 = vmatprep.subr.bf16.mxu0 0
          %732 = vmatpush1.bf16.msra.mxu0 %v710
          %733 = vmatprep.subr.bf16.mxu0 0
          %734 = vmatpush1.bf16.msra.mxu0 %v711
          %735 = vmatprep.subr.bf16.mxu0 0
          %736 = vmatpush1.bf16.msra.mxu0 %v712
          %737 = vmatprep.subr.bf16.mxu0 0
          %738 = vmatpush1.bf16.msra.mxu0 0
          %739 = vmatprep.subr.bf16.mxu0 0
          %740 = vmatpush1.bf16.msra.mxu0 0
          %741 = vmatprep.subr.bf16.mxu0 0
          %742 = vmatpush1.bf16.msra.mxu0 0
          %743 = vmatprep.subr.bf16.mxu0 0
          %744 = vmatpush1.bf16.msra.mxu0 0
          %745 = vmatprep.subr.bf16.mxu0 0
          %746 = vmatpush1.bf16.msra.mxu0 0
          %747 = vmatprep.subr.bf16.mxu0 0
          %748 = vmatpush1.bf16.msra.mxu0 0
          %749 = vmatprep.subr.bf16.mxu0 0
          %750 = vmatpush1.bf16.msra.mxu0 0
          %751 = vmatprep.subr.bf16.mxu0 0
          %752 = vmatpush1.bf16.msra.mxu0 0
          %753 = vmatprep.mubr.bf16.mxu0 0
          %754 = vmatmul.mubr.bf16.gmra.mrb[0].mxu0 %v649
          %v755 = vpop.f32.mrb[0].mxu0
          %v756 = vadd.f32 %v671, %v755
          %v757 = vpop.f32.mrb[0].mxu0
          %v758 = vpop.f32.mrb[0].mxu0
          %v759 = vpop.f32.mrb[0].mxu0
          %760 = vdwg.mxu0
          %761 = vst [vmem:[#allocation2] sm:$0xff] %v756
          %762 = vst [vmem:[#allocation14] sm:$0xff] 0.0
        $region104: #{tpu_custom_call.1} parent=67 // pred_fallthru
          _
        %v763 = vld [vmem:[#allocation2] sm:$0xff]
        %v764 = vld [vmem:[%s642] sm:$0x3f]
        %v765 = vpack.c.bf16 %v763, %v763
        %v766 = vld [vmem:[%s529] sm:$0xff]
        %v767 = vld [vmem:[%s529 + $0x8] sm:$0xf]
        %v768 = vld [vmem:[%s529 + $0xc] sm:$0xff]
        %v769 = vld [vmem:[%s529 + $0x14] sm:$0xf]
        %v770 = vld [vmem:[%s529 + $0x18] sm:$0xff]
        %v771 = vld [vmem:[%s529 + $0x20] sm:$0xf]
        %v772 = vld [vmem:[%s529 + $0x24] sm:$0xff]
        %v773 = vld [vmem:[%s529 + $0x2c] sm:$0xf]
        %v774 = vld [vmem:[%s529 + $0x30] sm:$0xff]
        %v775 = vld [vmem:[%s529 + $0x38] sm:$0xf]
        %v776 = vld [vmem:[%s529 + $0x3c] sm:$0xff]
        %v777 = vld [vmem:[%s529 + $0x44] sm:$0xf]
        %v778 = vld [vmem:[%s529 + $0x48] sm:$0xff]
        %v779 = vld [vmem:[%s529 + $0x50] sm:$0xf]
        %v780 = vld [vmem:[%s529 + $0x54] sm:$0xff]
        %v781 = vld [vmem:[%s529 + $0x5c] sm:$0xf]
        %v782 = vld [vmem:[%s529 + $0x60] sm:$0xff]
        %v783 = vld [vmem:[%s529 + $0x68] sm:$0xf]
        %v784 = vld [vmem:[%s529 + $0x6c] sm:$0xff]
        %v785 = vld [vmem:[%s529 + $0x74] sm:$0xf]
        %v786 = vld [vmem:[%s529 + $0x78] sm:$0xff]
        %v787 = vld [vmem:[%s529 + $0x80] sm:$0xf]
        %v788 = vld [vmem:[%s529 + $0x84] sm:$0xff]
        %v789 = vld [vmem:[%s529 + $0x8c] sm:$0xf]
        %v790 = vld [vmem:[%s529 + $0x90] sm:$0xff]
        %v791 = vld [vmem:[%s529 + $0x98] sm:$0xf]
        %v792 = vld [vmem:[%s529 + $0x9c] sm:$0xff]
        %v793 = vld [vmem:[%s529 + $0xa4] sm:$0xf]
        %v794 = vld [vmem:[%s529 + $0xa8] sm:$0xff]
        %v795 = vld [vmem:[%s529 + $0xb0] sm:$0xf]
        %v796 = vld [vmem:[%s529 + $0xb4] sm:$0xff]
        %v797 = vld [vmem:[%s529 + $0xbc] sm:$0xf]
        %v798 = vld [vmem:[%s538] sm:$0x7]
        %v800 = vlaneseq
        %v801 = vshrl.u32 %v800, 7
        %v802 = vsub.s32 0, %v801
        %v803 = vrot.slane %v798, %v802
        %v804 = vlaneseq
        %v805 = vshrl.u32 %v804, 7
        %v806 = vsub.s32 1, %v805
        %v807 = vrot.slane %v798, %v806
        %v808 = vlaneseq
        %v809 = vshrl.u32 %v808, 7
        %v810 = vsub.s32 2, %v809
        %v811 = vrot.slane %v798, %v810
        %v847 = vunpack.c.l.b16 %v766
        %v848 = vunpack.c.h.b16 %v766
        %v849 = vunpack.c.l.b16 %v767
        %v850 = vunpack.c.l.b16 %v768
        %v851 = vunpack.c.h.b16 %v768
        %v852 = vunpack.c.l.b16 %v769
        %v853 = vunpack.c.l.b16 %v770
        %v854 = vunpack.c.h.b16 %v770
        %v855 = vunpack.c.l.b16 %v771
        %v856 = vunpack.c.l.b16 %v772
        %v857 = vunpack.c.h.b16 %v772
        %v858 = vunpack.c.l.b16 %v773
        %v859 = vunpack.c.l.b16 %v774
        %v860 = vunpack.c.h.b16 %v774
        %v861 = vunpack.c.l.b16 %v775
        %v862 = vunpack.c.l.b16 %v776
        %v863 = vunpack.c.h.b16 %v776
        %v864 = vunpack.c.l.b16 %v777
        %v865 = vunpack.c.l.b16 %v778
        %v866 = vunpack.c.h.b16 %v778
        %v867 = vunpack.c.l.b16 %v779
        %v868 = vunpack.c.l.b16 %v780
        %v869 = vunpack.c.h.b16 %v780
        %v870 = vunpack.c.l.b16 %v781
        %v871 = vunpack.c.l.b16 %v782
        %v872 = vunpack.c.h.b16 %v782
        %v873 = vunpack.c.l.b16 %v783
        %v874 = vunpack.c.l.b16 %v784
        %v875 = vunpack.c.h.b16 %v784
        %v876 = vunpack.c.l.b16 %v785
        %v877 = vunpack.c.l.b16 %v786
        %v878 = vunpack.c.h.b16 %v786
        %v879 = vunpack.c.l.b16 %v787
        %v880 = vunpack.c.l.b16 %v788
        %v881 = vunpack.c.h.b16 %v788
        %v882 = vunpack.c.l.b16 %v789
        %v883 = vunpack.c.l.b16 %v790
        %v884 = vunpack.c.h.b16 %v790
        %v885 = vunpack.c.l.b16 %v791
        %v886 = vunpack.c.l.b16 %v792
        %v887 = vunpack.c.h.b16 %v792
        %v888 = vunpack.c.l.b16 %v793
        %v889 = vunpack.c.l.b16 %v794
        %v890 = vunpack.c.h.b16 %v794
        %v891 = vunpack.c.l.b16 %v795
        %v892 = vunpack.c.l.b16 %v796
        %v893 = vunpack.c.h.b16 %v796
        %v894 = vunpack.c.l.b16 %v797
        %v895 = vpack.c.b16 %v850, %v847
        %v896 = vpack.c.b16 %v851, %v848
        %v897 = vpack.c.b16 %v852, %v849
        %v898 = vpack.c.b16 %v856, %v853
        %v899 = vpack.c.b16 %v857, %v854
        %v900 = vpack.c.b16 %v858, %v855
        %v901 = vpack.c.b16 %v862, %v859
        %v902 = vpack.c.b16 %v863, %v860
        %v903 = vpack.c.b16 %v864, %v861
        %v904 = vpack.c.b16 %v868, %v865
        %v905 = vpack.c.b16 %v869, %v866
        %v906 = vpack.c.b16 %v870, %v867
        %v907 = vpack.c.b16 %v874, %v871
        %v908 = vpack.c.b16 %v875, %v872
        %v909 = vpack.c.b16 %v876, %v873
        %v910 = vpack.c.b16 %v880, %v877
        %v911 = vpack.c.b16 %v881, %v878
        %v912 = vpack.c.b16 %v882, %v879
        %v913 = vpack.c.b16 %v886, %v883
        %v914 = vpack.c.b16 %v887, %v884
        %v915 = vpack.c.b16 %v888, %v885
        %v916 = vpack.c.b16 %v892, %v889
        %v917 = vpack.c.b16 %v893, %v890
        %v918 = vpack.c.b16 %v894, %v891
        %943 = vmatprep.subr.bf16.mxu0 %v896
        %944 = vmatpush1.bf16.msra.mxu0 %v895
        %945 = vmatprep.subr.bf16.mxu0 %v899
        %946 = vmatpush1.bf16.msra.mxu0 %v898
        %947 = vmatprep.subr.bf16.mxu0 %v902
        %948 = vmatpush1.bf16.msra.mxu0 %v901
        %949 = vmatprep.subr.bf16.mxu0 %v905
        %950 = vmatpush1.bf16.msra.mxu0 %v904
        %951 = vmatprep.subr.bf16.mxu0 %v908
        %952 = vmatpush1.bf16.msra.mxu0 %v907
        %953 = vmatprep.subr.bf16.mxu0 %v911
        %954 = vmatpush1.bf16.msra.mxu0 %v910
        %955 = vmatprep.subr.bf16.mxu0 %v914
        %956 = vmatpush1.bf16.msra.mxu0 %v913
        %957 = vmatprep.subr.bf16.mxu0 %v917
        %958 = vmatpush1.bf16.msra.mxu0 %v916
        %959 = vmatprep.subr.bf16.mxu0 0
        %960 = vmatpush1.bf16.msra.mxu0 0
        %961 = vmatprep.subr.bf16.mxu0 0
        %962 = vmatpush1.bf16.msra.mxu0 0
        %963 = vmatprep.subr.bf16.mxu0 0
        %964 = vmatpush1.bf16.msra.mxu0 0
        %965 = vmatprep.subr.bf16.mxu0 0
        %966 = vmatpush1.bf16.msra.mxu0 0
        %967 = vmatprep.subr.bf16.mxu0 0
        %968 = vmatpush1.bf16.msra.mxu0 0
        %969 = vmatprep.subr.bf16.mxu0 0
        %970 = vmatpush1.bf16.msra.mxu0 0
        %971 = vmatprep.subr.bf16.mxu0 0
        %972 = vmatpush1.bf16.msra.mxu0 0
        %973 = vmatprep.subr.bf16.mxu0 0
        %974 = vmatpush1.bf16.msra.mxu0 0
        %975 = vmatprep.mubr.bf16.mxu0 0
        %976 = vmatmul.mubr.bf16.gmra.mrb[0].mxu0 %v765
        %v977 = vpop.f32.mrb[0].mxu0
        %v978 = vadd.f32 %v803, %v977
        %v979 = vpop.f32.mrb[0].mxu0
        %v980 = vadd.f32 %v807, %v979
        %v981 = vpop.f32.mrb[0].mxu0
        %v982 = vpop.f32.mrb[0].mxu0
        %983 = vdwg.mxu0
        %984 = vmatprep.subr.bf16.mxu0 0
        %985 = vmatpush1.bf16.msra.mxu0 %v897
        %986 = vmatprep.subr.bf16.mxu0 0
        %987 = vmatpush1.bf16.msra.mxu0 %v900
        %988 = vmatprep.subr.bf16.mxu0 0
        %989 = vmatpush1.bf16.msra.mxu0 %v903
        %990 = vmatprep.subr.bf16.mxu0 0
        %991 = vmatpush1.bf16.msra.mxu0 %v906
        %992 = vmatprep.subr.bf16.mxu0 0
        %993 = vmatpush1.bf16.msra.mxu0 %v909
        %994 = vmatprep.subr.bf16.mxu0 0
        %995 = vmatpush1.bf16.msra.mxu0 %v912
        %996 = vmatprep.subr.bf16.mxu0 0
        %997 = vmatpush1.bf16.msra.mxu0 %v915
        %998 = vmatprep.subr.bf16.mxu0 0
        %999 = vmatpush1.bf16.msra.mxu0 %v918
        %1000 = vmatprep.subr.bf16.mxu0 0
        %1001 = vmatpush1.bf16.msra.mxu0 0
        %1002 = vmatprep.subr.bf16.mxu0 0
        %1003 = vmatpush1.bf16.msra.mxu0 0
        %1004 = vmatprep.subr.bf16.mxu0 0
        %1005 = vmatpush1.bf16.msra.mxu0 0
        %1006 = vmatprep.subr.bf16.mxu0 0
        %1007 = vmatpush1.bf16.msra.mxu0 0
        %1008 = vmatprep.subr.bf16.mxu0 0
        %1009 = vmatpush1.bf16.msra.mxu0 0
        %1010 = vmatprep.subr.bf16.mxu0 0
        %1011 = vmatpush1.bf16.msra.mxu0 0
        %1012 = vmatprep.subr.bf16.mxu0 0
        %1013 = vmatpush1.bf16.msra.mxu0 0
        %1014 = vmatprep.subr.bf16.mxu0 0
        %1015 = vmatpush1.bf16.msra.mxu0 0
        %1016 = vmatprep.mubr.bf16.mxu0 0
        %1017 = vmatmul.mubr.bf16.gmra.mrb[0].mxu0 %v765
        %v1018 = vpop.f32.mrb[0].mxu0
        %v1019 = vadd.f32 %v811, %v1018
        %v1020 = vpop.f32.mrb[0].mxu0
        %v1021 = vpop.f32.mrb[0].mxu0
        %v1022 = vpop.f32.mrb[0].mxu0
        %1023 = vdwg.mxu0
        %v1024 = vpack.c.bf16 %v978, %v978
        %1026 = vrot.lane.b32.xlu0 %v1024, 96
        %v1027 = vpop.permute.xlu0 %1026
        %1028 = vrot.lane.b32.xlu0 %v1024, 64
        %v1029 = vpop.permute.xlu0 %1028
        %1030 = vrot.lane.b32.xlu0 %v1024, 32
        %v1031 = vpop.permute.xlu0 %1030
        %v1032 = vpack.c.bf16 %v980, %v980
        %1034 = vrot.lane.b32.xlu0 %v1032, 96
        %v1035 = vpop.permute.xlu0 %1034
        %1037 = vrot.lane.b32.xlu0 %v1032, 64
        %v1038 = vpop.permute.xlu0 %1037
        %1040 = vrot.lane.b32.xlu0 %v1032, 32
        %v1041 = vpop.permute.xlu0 %1040
        %v1043 = vpack.c.bf16 %v1019, %v1019
        %1045 = vrot.lane.b32.xlu0 %v1043, 96
        %v1046 = vpop.permute.xlu0 %1045
        %1048 = vrot.lane.b32.xlu0 %v1043, 64
        %v1049 = vpop.permute.xlu0 %1048
        %1051 = vrot.lane.b32.xlu0 %v1043, 32
        %v1052 = vpop.permute.xlu0 %1051
        %1054 = vxpose.xlu0.c.b16.start [1/8] %v1032, 128
        %1055 = vxpose.xlu0.c.b16.cont [2/8] 0, 128
        %1056 = vxpose.xlu0.c.b16.cont [3/8] 0, 128
        %1057 = vxpose.xlu0.c.b16.cont [4/8] 0, 128
        %1058 = vxpose.xlu0.c.b16.cont [5/8] 0, 128
        %1059 = vxpose.xlu0.c.b16.cont [6/8] 0, 128
        %1060 = vxpose.xlu0.c.b16.cont [7/8] 0, 128
        %1061 = vxpose.xlu0.c.b16.end [8/8] 0, 128
        %v1062 = vpop.trf.xlu0
        %v1063 = vpop.trf.xlu0
        %v1064 = vpop.trf.xlu0
        %v1065 = vpop.trf.xlu0
        %v1066 = vpop.trf.xlu0
        %v1067 = vpop.trf.xlu0
        %v1068 = vpop.trf.xlu0
        %v1069 = vpop.trf.xlu0
        %1070 = vxpose.xlu0.c.b16.start [1/8] %v1035, 128
        %1071 = vxpose.xlu0.c.b16.cont [2/8] 0, 128
        %1072 = vxpose.xlu0.c.b16.cont [3/8] 0, 128
        %1073 = vxpose.xlu0.c.b16.cont [4/8] 0, 128
        %1074 = vxpose.xlu0.c.b16.cont [5/8] 0, 128
        %1075 = vxpose.xlu0.c.b16.cont [6/8] 0, 128
        %1076 = vxpose.xlu0.c.b16.cont [7/8] 0, 128
        %1077 = vxpose.xlu0.c.b16.end [8/8] 0, 128
        %v1078 = vpop.trf.xlu0
        %v1079 = vpop.trf.xlu0
        %v1080 = vpop.trf.xlu0
        %v1081 = vpop.trf.xlu0
        %v1082 = vpop.trf.xlu0
        %v1083 = vpop.trf.xlu0
        %v1084 = vpop.trf.xlu0
        %v1085 = vpop.trf.xlu0
        %1086 = vxpose.xlu0.c.b16.start [1/8] %v1038, 128
        %1087 = vxpose.xlu0.c.b16.cont [2/8] 0, 128
        %1088 = vxpose.xlu0.c.b16.cont [3/8] 0, 128
        %1089 = vxpose.xlu0.c.b16.cont [4/8] 0, 128
        %1090 = vxpose.xlu0.c.b16.cont [5/8] 0, 128
        %1091 = vxpose.xlu0.c.b16.cont [6/8] 0, 128
        %1092 = vxpose.xlu0.c.b16.cont [7/8] 0, 128
        %1093 = vxpose.xlu0.c.b16.end [8/8] 0, 128
        %v1094 = vpop.trf.xlu0
        %v1095 = vpop.trf.xlu0
        %v1096 = vpop.trf.xlu0
        %v1097 = vpop.trf.xlu0
        %v1098 = vpop.trf.xlu0
        %v1099 = vpop.trf.xlu0
        %v1100 = vpop.trf.xlu0
        %v1101 = vpop.trf.xlu0
        %1102 = vxpose.xlu0.c.b16.start [1/8] %v1041, 128
        %1103 = vxpose.xlu0.c.b16.cont [2/8] 0, 128
        %1104 = vxpose.xlu0.c.b16.cont [3/8] 0, 128
        %1105 = vxpose.xlu0.c.b16.cont [4/8] 0, 128
        %1106 = vxpose.xlu0.c.b16.cont [5/8] 0, 128
        %1107 = vxpose.xlu0.c.b16.cont [6/8] 0, 128
        %1108 = vxpose.xlu0.c.b16.cont [7/8] 0, 128
        %1109 = vxpose.xlu0.c.b16.end [8/8] 0, 128
        %v1110 = vpop.trf.xlu0
        %v1111 = vpop.trf.xlu0
        %v1112 = vpop.trf.xlu0
        %v1113 = vpop.trf.xlu0
        %v1114 = vpop.trf.xlu0
        %v1115 = vpop.trf.xlu0
        %v1116 = vpop.trf.xlu0
        %v1117 = vpop.trf.xlu0
        %vm1118 = vcmask 261120
        %v1120 = vsel %vm1118, %v1024, 0
        %1122 = vmatprep.subr.bf16.mxu0 0
        %1123 = vmatpush1.bf16.msra.mxu0 %v1062
        %1124 = vmatprep.subr.bf16.mxu0 0
        %1125 = vmatpush1.bf16.msra.mxu0 %v1063
        %1126 = vmatprep.subr.bf16.mxu0 0
        %1127 = vmatpush1.bf16.msra.mxu0 0
        %1128 = vmatprep.subr.bf16.mxu0 0
        %1129 = vmatpush1.bf16.msra.mxu0 0
        %1130 = vmatprep.subr.bf16.mxu0 0
        %1131 = vmatpush1.bf16.msra.mxu0 0
        %1132 = vmatprep.subr.bf16.mxu0 0
        %1133 = vmatpush1.bf16.msra.mxu0 0
        %1134 = vmatprep.subr.bf16.mxu0 0
        %1135 = vmatpush1.bf16.msra.mxu0 0
        %1136 = vmatprep.subr.bf16.mxu0 0
        %1137 = vmatpush1.bf16.msra.mxu0 0
        %1138 = vmatprep.subr.bf16.mxu0 0
        %1139 = vmatpush1.bf16.msra.mxu0 0
        %1140 = vmatprep.subr.bf16.mxu0 0
        %1141 = vmatpush1.bf16.msra.mxu0 0
        %1142 = vmatprep.subr.bf16.mxu0 0
        %1143 = vmatpush1.bf16.msra.mxu0 0
        %1144 = vmatprep.subr.bf16.mxu0 0
        %1145 = vmatpush1.bf16.msra.mxu0 0
        %1146 = vmatprep.subr.bf16.mxu0 0
        %1147 = vmatpush1.bf16.msra.mxu0 0
        %1148 = vmatprep.subr.bf16.mxu0 0
        %1149 = vmatpush1.bf16.msra.mxu0 0
        %1150 = vmatprep.subr.bf16.mxu0 0
        %1151 = vmatpush1.bf16.msra.mxu0 0
        %1152 = vmatprep.subr.bf16.mxu0 0
        %1153 = vmatpush1.bf16.msra.mxu0 0
        %1154 = vmatprep.mubr.bf16.mxu0 0
        %1155 = vmatmul.mubr.bf16.gmra.mrb[0].mxu0 %v1120
        %v1156 = vpop.f32.mrb[0].mxu0
        %v1157 = vadd.f32 0.0, %v1156
        %v1158 = vpop.f32.mrb[0].mxu0
        %v1159 = vpop.f32.mrb[0].mxu0
        %v1160 = vpop.f32.mrb[0].mxu0
        %1161 = vdwg.mxu0
        %v1163 = vsel %vm1118, %v1027, 0
        %1165 = vmatprep.subr.bf16.mxu0 0
        %1166 = vmatpush1.bf16.msra.mxu0 %v1078
        %1167 = vmatprep.subr.bf16.mxu0 0
        %1168 = vmatpush1.bf16.msra.mxu0 %v1079
        %1169 = vmatprep.subr.bf16.mxu0 0
        %1170 = vmatpush1.bf16.msra.mxu0 0
        %1171 = vmatprep.subr.bf16.mxu0 0
        %1172 = vmatpush1.bf16.msra.mxu0 0
        %1173 = vmatprep.subr.bf16.mxu0 0
        %1174 = vmatpush1.bf16.msra.mxu0 0
        %1175 = vmatprep.subr.bf16.mxu0 0
        %1176 = vmatpush1.bf16.msra.mxu0 0
        %1177 = vmatprep.subr.bf16.mxu0 0
        %1178 = vmatpush1.bf16.msra.mxu0 0
        %1179 = vmatprep.subr.bf16.mxu0 0
        %1180 = vmatpush1.bf16.msra.mxu0 0
        %1181 = vmatprep.subr.bf16.mxu0 0
        %1182 = vmatpush1.bf16.msra.mxu0 0
        %1183 = vmatprep.subr.bf16.mxu0 0
        %1184 = vmatpush1.bf16.msra.mxu0 0
        %1185 = vmatprep.subr.bf16.mxu0 0
        %1186 = vmatpush1.bf16.msra.mxu0 0
        %1187 = vmatprep.subr.bf16.mxu0 0
        %1188 = vmatpush1.bf16.msra.mxu0 0
        %1189 = vmatprep.subr.bf16.mxu0 0
        %1190 = vmatpush1.bf16.msra.mxu0 0
        %1191 = vmatprep.subr.bf16.mxu0 0
        %1192 = vmatpush1.bf16.msra.mxu0 0
        %1193 = vmatprep.subr.bf16.mxu0 0
        %1194 = vmatpush1.bf16.msra.mxu0 0
        %1195 = vmatprep.subr.bf16.mxu0 0
        %1196 = vmatpush1.bf16.msra.mxu0 0
        %1197 = vmatprep.mubr.bf16.mxu0 0
        %1198 = vmatmul.mubr.bf16.gmra.mrb[0].mxu0 %v1163
        %v1199 = vpop.f32.mrb[0].mxu0
        %v1200 = vadd.f32 0.0, %v1199
        %v1201 = vpop.f32.mrb[0].mxu0
        %v1202 = vpop.f32.mrb[0].mxu0
        %v1203 = vpop.f32.mrb[0].mxu0
        %1204 = vdwg.mxu0
        %v1206 = vsel %vm1118, %v1029, 0
        %1208 = vmatprep.subr.bf16.mxu0 0
        %1209 = vmatpush1.bf16.msra.mxu0 %v1094
        %1210 = vmatprep.subr.bf16.mxu0 0
        %1211 = vmatpush1.bf16.msra.mxu0 %v1095
        %1212 = vmatprep.subr.bf16.mxu0 0
        %1213 = vmatpush1.bf16.msra.mxu0 0
        %1214 = vmatprep.subr.bf16.mxu0 0
        %1215 = vmatpush1.bf16.msra.mxu0 0
        %1216 = vmatprep.subr.bf16.mxu0 0
        %1217 = vmatpush1.bf16.msra.mxu0 0
        %1218 = vmatprep.subr.bf16.mxu0 0
        %1219 = vmatpush1.bf16.msra.mxu0 0
        %1220 = vmatprep.subr.bf16.mxu0 0
        %1221 = vmatpush1.bf16.msra.mxu0 0
        %1222 = vmatprep.subr.bf16.mxu0 0
        %1223 = vmatpush1.bf16.msra.mxu0 0
        %1224 = vmatprep.subr.bf16.mxu0 0
        %1225 = vmatpush1.bf16.msra.mxu0 0
        %1226 = vmatprep.subr.bf16.mxu0 0
        %1227 = vmatpush1.bf16.msra.mxu0 0
        %1228 = vmatprep.subr.bf16.mxu0 0
        %1229 = vmatpush1.bf16.msra.mxu0 0
        %1230 = vmatprep.subr.bf16.mxu0 0
        %1231 = vmatpush1.bf16.msra.mxu0 0
        %1232 = vmatprep.subr.bf16.mxu0 0
        %1233 = vmatpush1.bf16.msra.mxu0 0
        %1234 = vmatprep.subr.bf16.mxu0 0
        %1235 = vmatpush1.bf16.msra.mxu0 0
        %1236 = vmatprep.subr.bf16.mxu0 0
        %1237 = vmatpush1.bf16.msra.mxu0 0
        %1238 = vmatprep.subr.bf16.mxu0 0
        %1239 = vmatpush1.bf16.msra.mxu0 0
        %1240 = vmatprep.mubr.bf16.mxu0 0
        %1241 = vmatmul.mubr.bf16.gmra.mrb[0].mxu0 %v1206
        %v1242 = vpop.f32.mrb[0].mxu0
        %v1243 = vadd.f32 0.0, %v1242
        %v1244 = vpop.f32.mrb[0].mxu0
        %v1245 = vpop.f32.mrb[0].mxu0
        %v1246 = vpop.f32.mrb[0].mxu0
        %1247 = vdwg.mxu0
        %v1249 = vsel %vm1118, %v1031, 0
        %1251 = vmatprep.subr.bf16.mxu0 0
        %1252 = vmatpush1.bf16.msra.mxu0 %v1110
        %1253 = vmatprep.subr.bf16.mxu0 0
        %1254 = vmatpush1.bf16.msra.mxu0 %v1111
        %1255 = vmatprep.subr.bf16.mxu0 0
        %1256 = vmatpush1.bf16.msra.mxu0 0
        %1257 = vmatprep.subr.bf16.mxu0 0
        %1258 = vmatpush1.bf16.msra.mxu0 0
        %1259 = vmatprep.subr.bf16.mxu0 0
        %1260 = vmatpush1.bf16.msra.mxu0 0
        %1261 = vmatprep.subr.bf16.mxu0 0
        %1262 = vmatpush1.bf16.msra.mxu0 0
        %1263 = vmatprep.subr.bf16.mxu0 0
        %1264 = vmatpush1.bf16.msra.mxu0 0
        %1265 = vmatprep.subr.bf16.mxu0 0
        %1266 = vmatpush1.bf16.msra.mxu0 0
        %1267 = vmatprep.subr.bf16.mxu0 0
        %1268 = vmatpush1.bf16.msra.mxu0 0
        %1269 = vmatprep.subr.bf16.mxu0 0
        %1270 = vmatpush1.bf16.msra.mxu0 0
        %1271 = vmatprep.subr.bf16.mxu0 0
        %1272 = vmatpush1.bf16.msra.mxu0 0
        %1273 = vmatprep.subr.bf16.mxu0 0
        %1274 = vmatpush1.bf16.msra.mxu0 0
        %1275 = vmatprep.subr.bf16.mxu0 0
        %1276 = vmatpush1.bf16.msra.mxu0 0
        %1277 = vmatprep.subr.bf16.mxu0 0
        %1278 = vmatpush1.bf16.msra.mxu0 0
        %1279 = vmatprep.subr.bf16.mxu0 0
        %1280 = vmatpush1.bf16.msra.mxu0 0
        %1281 = vmatprep.subr.bf16.mxu0 0
        %1282 = vmatpush1.bf16.msra.mxu0 0
        %1283 = vmatprep.mubr.bf16.mxu0 0
        %1284 = vmatmul.mubr.bf16.gmra.mrb[0].mxu0 %v1249
        %v1285 = vpop.f32.mrb[0].mxu0
        %v1286 = vadd.f32 0.0, %v1285
        %v1287 = vpop.f32.mrb[0].mxu0
        %v1288 = vpop.f32.mrb[0].mxu0
        %v1289 = vpop.f32.mrb[0].mxu0
        %1290 = vdwg.mxu0
        %vm1291 = vcmask 64512
        %v1292 = vsel %vm1291, %v1157, -inf
        %1293 = vmax.xlane.f32.xlu0 %v1292
        %v1294 = vpop.xlane.xlu0 %1293
        %v1295 = vsel %vm1291, %v1200, -inf
        %1296 = vmax.xlane.f32.xlu0 %v1295
        %v1297 = vpop.xlane.xlu0 %1296
        %v1298 = vsel %vm1291, %v1243, -inf
        %1299 = vmax.xlane.f32.xlu0 %v1298
        %v1300 = vpop.xlane.xlu0 %1299
        %v1301 = vsel %vm1291, %v1286, -inf
        %1302 = vmax.xlane.f32.xlu0 %v1301
        %v1303 = vpop.xlane.xlu0 %1302
        %v1304 = vsub.f32 %v1157, %v1294
        %v1305 = vsub.f32 %v1200, %v1297
        %v1306 = vsub.f32 %v1243, %v1300
        %v1307 = vsub.f32 %v1286, %v1303
        %v1308 = vmul.f32 %v1304, 1.442695
        %v1309 = vpow.pop %v1308
        %v1310 = vmul.f32 %v1305, 1.442695
        %v1311 = vpow.pop %v1310
        %v1312 = vmul.f32 %v1306, 1.442695
        %v1313 = vpow.pop %v1312
        %v1314 = vmul.f32 %v1307, 1.442695
        %v1315 = vpow.pop %v1314
        %v1316 = vsel %vm1291, %v1309, 0.0
        %1317 = vadd.xlane.f32.xlu0 %v1316
        %v1318 = vpop.xlane.xlu0 %1317
        %v1319 = vsel %vm1291, %v1311, 0.0
        %1320 = vadd.xlane.f32.xlu0 %v1319
        %v1321 = vpop.xlane.xlu0 %1320
        %v1322 = vsel %vm1291, %v1313, 0.0
        %1323 = vadd.xlane.f32.xlu0 %v1322
        %v1324 = vpop.xlane.xlu0 %1323
        %v1325 = vsel %vm1291, %v1315, 0.0
        %1326 = vadd.xlane.f32.xlu0 %v1325
        %v1327 = vpop.xlane.xlu0 %1326
        %v1328 = vrcp.pop %v1318
        %v1329 = vrcp.pop %v1321
        %v1330 = vrcp.pop %v1324
        %v1331 = vrcp.pop %v1327
        %v1332 = vmul.f32 %v1309, %v1328
        %v1333 = vmul.f32 %v1311, %v1329
        %v1334 = vmul.f32 %v1313, %v1330
        %v1335 = vmul.f32 %v1315, %v1331
        %v1336 = vpack.c.bf16 %v1332, %v1332
        %v1337 = vpack.c.bf16 %v1333, %v1333
        %v1338 = vpack.c.bf16 %v1334, %v1334
        %v1339 = vpack.c.bf16 %v1335, %v1335
        %1340 = vxpose.xlu0.c.b16.start [1/8] %v1043, 128
        %1341 = vxpose.xlu0.c.b16.cont [2/8] 0, 128
        %1342 = vxpose.xlu0.c.b16.cont [3/8] 0, 128
        %1343 = vxpose.xlu0.c.b16.cont [4/8] 0, 128
        %1344 = vxpose.xlu0.c.b16.cont [5/8] 0, 128
        %1345 = vxpose.xlu0.c.b16.cont [6/8] 0, 128
        %1346 = vxpose.xlu0.c.b16.cont [7/8] 0, 128
        %1347 = vxpose.xlu0.c.b16.end [8/8] 0, 128
        %v1348 = vpop.trf.xlu0
        %v1349 = vpop.trf.xlu0
        %v1350 = vpop.trf.xlu0
        %v1351 = vpop.trf.xlu0
        %v1352 = vpop.trf.xlu0
        %v1353 = vpop.trf.xlu0
        %v1354 = vpop.trf.xlu0
        %v1355 = vpop.trf.xlu0
        %1356 = vxpose.xlu0.c.b16.start [1/8] %v1046, 128
        %1357 = vxpose.xlu0.c.b16.cont [2/8] 0, 128
        %1358 = vxpose.xlu0.c.b16.cont [3/8] 0, 128
        %1359 = vxpose.xlu0.c.b16.cont [4/8] 0, 128
        %1360 = vxpose.xlu0.c.b16.cont [5/8] 0, 128
        %1361 = vxpose.xlu0.c.b16.cont [6/8] 0, 128
        %1362 = vxpose.xlu0.c.b16.cont [7/8] 0, 128
        %1363 = vxpose.xlu0.c.b16.end [8/8] 0, 128
        %v1364 = vpop.trf.xlu0
        %v1365 = vpop.trf.xlu0
        %v1366 = vpop.trf.xlu0
        %v1367 = vpop.trf.xlu0
        %v1368 = vpop.trf.xlu0
        %v1369 = vpop.trf.xlu0
        %v1370 = vpop.trf.xlu0
        %v1371 = vpop.trf.xlu0
        %1372 = vxpose.xlu0.c.b16.start [1/8] %v1049, 128
        %1373 = vxpose.xlu0.c.b16.cont [2/8] 0, 128
        %1374 = vxpose.xlu0.c.b16.cont [3/8] 0, 128
        %1375 = vxpose.xlu0.c.b16.cont [4/8] 0, 128
        %1376 = vxpose.xlu0.c.b16.cont [5/8] 0, 128
        %1377 = vxpose.xlu0.c.b16.cont [6/8] 0, 128
        %1378 = vxpose.xlu0.c.b16.cont [7/8] 0, 128
        %1379 = vxpose.xlu0.c.b16.end [8/8] 0, 128
        %v1380 = vpop.trf.xlu0
        %v1381 = vpop.trf.xlu0
        %v1382 = vpop.trf.xlu0
        %v1383 = vpop.trf.xlu0
        %v1384 = vpop.trf.xlu0
        %v1385 = vpop.trf.xlu0
        %v1386 = vpop.trf.xlu0
        %v1387 = vpop.trf.xlu0
        %1388 = vxpose.xlu0.c.b16.start [1/8] %v1052, 128
        %1389 = vxpose.xlu0.c.b16.cont [2/8] 0, 128
        %1390 = vxpose.xlu0.c.b16.cont [3/8] 0, 128
        %1391 = vxpose.xlu0.c.b16.cont [4/8] 0, 128
        %1392 = vxpose.xlu0.c.b16.cont [5/8] 0, 128
        %1393 = vxpose.xlu0.c.b16.cont [6/8] 0, 128
        %1394 = vxpose.xlu0.c.b16.cont [7/8] 0, 128
        %1395 = vxpose.xlu0.c.b16.end [8/8] 0, 128
        %v1396 = vpop.trf.xlu0
        %v1397 = vpop.trf.xlu0
        %v1398 = vpop.trf.xlu0
        %v1399 = vpop.trf.xlu0
        %v1400 = vpop.trf.xlu0
        %v1401 = vpop.trf.xlu0
        %v1402 = vpop.trf.xlu0
        %v1403 = vpop.trf.xlu0
        %v1405 = vsel %vm1291, %v1348, 0
        %v1408 = vsel %vm1291, %v1349, 0
        %v1411 = vsel %vm1291, %v1336, 0
        %1413 = vmatprep.subr.bf16.mxu0 0
        %1414 = vmatpush1.bf16.xpose.msra.mxu0 %v1411
        %1415 = vmatprep.subr.bf16.mxu0 0
        %1416 = vmatpush1.bf16.xpose.msra.mxu0 0
        %1417 = vmatprep.subr.bf16.mxu0 0
        %1418 = vmatpush1.bf16.xpose.msra.mxu0 0
        %1419 = vmatprep.subr.bf16.mxu0 0
        %1420 = vmatpush1.bf16.xpose.msra.mxu0 0
        %1421 = vmatprep.subr.bf16.mxu0 0
        %1422 = vmatpush1.bf16.xpose.msra.mxu0 0
        %1423 = vmatprep.subr.bf16.mxu0 0
        %1424 = vmatpush1.bf16.xpose.msra.mxu0 0
        %1425 = vmatprep.subr.bf16.mxu0 0
        %1426 = vmatpush1.bf16.xpose.msra.mxu0 0
        %1427 = vmatprep.subr.bf16.mxu0 0
        %1428 = vmatpush1.bf16.xpose.msra.mxu0 0
        %1429 = vmatprep.subr.bf16.mxu0 0
        %1430 = vmatpush1.bf16.xpose.msra.mxu0 0
        %1431 = vmatprep.subr.bf16.mxu0 0
        %1432 = vmatpush1.bf16.xpose.msra.mxu0 0
        %1433 = vmatprep.subr.bf16.mxu0 0
        %1434 = vmatpush1.bf16.xpose.msra.mxu0 0
        %1435 = vmatprep.subr.bf16.mxu0 0
        %1436 = vmatpush1.bf16.xpose.msra.mxu0 0
        %1437 = vmatprep.subr.bf16.mxu0 0
        %1438 = vmatpush1.bf16.xpose.msra.mxu0 0
        %1439 = vmatprep.subr.bf16.mxu0 0
        %1440 = vmatpush1.bf16.xpose.msra.mxu0 0
        %1441 = vmatprep.subr.bf16.mxu0 0
        %1442 = vmatpush1.bf16.xpose.msra.mxu0 0
        %1443 = vmatprep.subr.bf16.mxu0 0
        %1444 = vmatpush1.bf16.xpose.msra.mxu0 0
        %1445 = vmatprep.mubr.bf16.mxu0 0
        %1446 = vmatmul.mubr.bf16.gmra.mrb[0].mxu0 %v1405
        %v1447 = vpop.f32.mrb[0].mxu0
        %v1448 = vadd.f32 0.0, %v1447
        %v1449 = vpop.f32.mrb[0].mxu0
        %v1450 = vpop.f32.mrb[0].mxu0
        %v1451 = vadd.f32 0.0, %v1450
        %v1452 = vpop.f32.mrb[0].mxu0
        %1453 = vmatprep.mubr.bf16.mxu0 0
        %1454 = vmatmul.mubr.bf16.gmra.mrb[0].mxu0 %v1408
        %v1455 = vpop.f32.mrb[0].mxu0
        %v1456 = vadd.f32 0.0, %v1455
        %v1457 = vpop.f32.mrb[0].mxu0
        %v1458 = vpop.f32.mrb[0].mxu0
        %v1459 = vadd.f32 0.0, %v1458
        %v1460 = vpop.f32.mrb[0].mxu0
        %1461 = vdwg.mxu0
        %v1463 = vsel %vm1291, %v1364, 0
        %v1466 = vsel %vm1291, %v1365, 0
        %v1469 = vsel %vm1291, %v1337, 0
        %1471 = vmatprep.subr.bf16.mxu0 0
        %1472 = vmatpush1.bf16.xpose.msra.mxu0 %v1469
        %1473 = vmatprep.subr.bf16.mxu0 0
        %1474 = vmatpush1.bf16.xpose.msra.mxu0 0
        %1475 = vmatprep.subr.bf16.mxu0 0
        %1476 = vmatpush1.bf16.xpose.msra.mxu0 0
        %1477 = vmatprep.subr.bf16.mxu0 0
        %1478 = vmatpush1.bf16.xpose.msra.mxu0 0
        %1479 = vmatprep.subr.bf16.mxu0 0
        %1480 = vmatpush1.bf16.xpose.msra.mxu0 0
        %1481 = vmatprep.subr.bf16.mxu0 0
        %1482 = vmatpush1.bf16.xpose.msra.mxu0 0
        %1483 = vmatprep.subr.bf16.mxu0 0
        %1484 = vmatpush1.bf16.xpose.msra.mxu0 0
        %1485 = vmatprep.subr.bf16.mxu0 0
        %1486 = vmatpush1.bf16.xpose.msra.mxu0 0
        %1487 = vmatprep.subr.bf16.mxu0 0
        %1488 = vmatpush1.bf16.xpose.msra.mxu0 0
        %1489 = vmatprep.subr.bf16.mxu0 0
        %1490 = vmatpush1.bf16.xpose.msra.mxu0 0
        %1491 = vmatprep.subr.bf16.mxu0 0
        %1492 = vmatpush1.bf16.xpose.msra.mxu0 0
        %1493 = vmatprep.subr.bf16.mxu0 0
        %1494 = vmatpush1.bf16.xpose.msra.mxu0 0
        %1495 = vmatprep.subr.bf16.mxu0 0
        %1496 = vmatpush1.bf16.xpose.msra.mxu0 0
        %1497 = vmatprep.subr.bf16.mxu0 0
        %1498 = vmatpush1.bf16.xpose.msra.mxu0 0
        %1499 = vmatprep.subr.bf16.mxu0 0
        %1500 = vmatpush1.bf16.xpose.msra.mxu0 0
        %1501 = vmatprep.subr.bf16.mxu0 0
        %1502 = vmatpush1.bf16.xpose.msra.mxu0 0
        %1503 = vmatprep.mubr.bf16.mxu0 0
        %1504 = vmatmul.mubr.bf16.gmra.mrb[0].mxu0 %v1463
        %v1505 = vpop.f32.mrb[0].mxu0
        %v1506 = vadd.f32 0.0, %v1505
        %v1507 = vpop.f32.mrb[0].mxu0
        %v1508 = vpop.f32.mrb[0].mxu0
        %v1509 = vadd.f32 0.0, %v1508
        %v1510 = vpop.f32.mrb[0].mxu0
        %1511 = vmatprep.mubr.bf16.mxu0 0
        %1512 = vmatmul.mubr.bf16.gmra.mrb[0].mxu0 %v1466
        %v1513 = vpop.f32.mrb[0].mxu0
        %v1514 = vadd.f32 0.0, %v1513
        %v1515 = vpop.f32.mrb[0].mxu0
        %v1516 = vpop.f32.mrb[0].mxu0
        %v1517 = vadd.f32 0.0, %v1516
        %v1518 = vpop.f32.mrb[0].mxu0
        %1519 = vdwg.mxu0
        %v1521 = vsel %vm1291, %v1380, 0
        %v1524 = vsel %vm1291, %v1381, 0
        %v1527 = vsel %vm1291, %v1338, 0
        %1529 = vmatprep.subr.bf16.mxu0 0
        %1530 = vmatpush1.bf16.xpose.msra.mxu0 %v1527
        %1531 = vmatprep.subr.bf16.mxu0 0
        %1532 = vmatpush1.bf16.xpose.msra.mxu0 0
        %1533 = vmatprep.subr.bf16.mxu0 0
        %1534 = vmatpush1.bf16.xpose.msra.mxu0 0
        %1535 = vmatprep.subr.bf16.mxu0 0
        %1536 = vmatpush1.bf16.xpose.msra.mxu0 0
        %1537 = vmatprep.subr.bf16.mxu0 0
        %1538 = vmatpush1.bf16.xpose.msra.mxu0 0
        %1539 = vmatprep.subr.bf16.mxu0 0
        %1540 = vmatpush1.bf16.xpose.msra.mxu0 0
        %1541 = vmatprep.subr.bf16.mxu0 0
        %1542 = vmatpush1.bf16.xpose.msra.mxu0 0
        %1543 = vmatprep.subr.bf16.mxu0 0
        %1544 = vmatpush1.bf16.xpose.msra.mxu0 0
        %1545 = vmatprep.subr.bf16.mxu0 0
        %1546 = vmatpush1.bf16.xpose.msra.mxu0 0
        %1547 = vmatprep.subr.bf16.mxu0 0
        %1548 = vmatpush1.bf16.xpose.msra.mxu0 0
        %1549 = vmatprep.subr.bf16.mxu0 0
        %1550 = vmatpush1.bf16.xpose.msra.mxu0 0
        %1551 = vmatprep.subr.bf16.mxu0 0
        %1552 = vmatpush1.bf16.xpose.msra.mxu0 0
        %1553 = vmatprep.subr.bf16.mxu0 0
        %1554 = vmatpush1.bf16.xpose.msra.mxu0 0
        %1555 = vmatprep.subr.bf16.mxu0 0
        %1556 = vmatpush1.bf16.xpose.msra.mxu0 0
        %1557 = vmatprep.subr.bf16.mxu0 0
        %1558 = vmatpush1.bf16.xpose.msra.mxu0 0
        %1559 = vmatprep.subr.bf16.mxu0 0
        %1560 = vmatpush1.bf16.xpose.msra.mxu0 0
        %1561 = vmatprep.mubr.bf16.mxu0 0
        %1562 = vmatmul.mubr.bf16.gmra.mrb[0].mxu0 %v1521
        %v1563 = vpop.f32.mrb[0].mxu0
        %v1564 = vadd.f32 0.0, %v1563
        %v1565 = vpop.f32.mrb[0].mxu0
        %v1566 = vpop.f32.mrb[0].mxu0
        %v1567 = vadd.f32 0.0, %v1566
        %v1568 = vpop.f32.mrb[0].mxu0
        %1569 = vmatprep.mubr.bf16.mxu0 0
        %1570 = vmatmul.mubr.bf16.gmra.mrb[0].mxu0 %v1524
        %v1571 = vpop.f32.mrb[0].mxu0
        %v1572 = vadd.f32 0.0, %v1571
        %v1573 = vpop.f32.mrb[0].mxu0
        %v1574 = vpop.f32.mrb[0].mxu0
        %v1575 = vadd.f32 0.0, %v1574
        %v1576 = vpop.f32.mrb[0].mxu0
        %1577 = vdwg.mxu0
        %v1579 = vsel %vm1291, %v1396, 0
        %v1582 = vsel %vm1291, %v1397, 0
        %v1585 = vsel %vm1291, %v1339, 0
        %1587 = vmatprep.subr.bf16.mxu0 0
        %1588 = vmatpush1.bf16.xpose.msra.mxu0 %v1585
        %1589 = vmatprep.subr.bf16.mxu0 0
        %1590 = vmatpush1.bf16.xpose.msra.mxu0 0
        %1591 = vmatprep.subr.bf16.mxu0 0
        %1592 = vmatpush1.bf16.xpose.msra.mxu0 0
        %1593 = vmatprep.subr.bf16.mxu0 0
        %1594 = vmatpush1.bf16.xpose.msra.mxu0 0
        %1595 = vmatprep.subr.bf16.mxu0 0
        %1596 = vmatpush1.bf16.xpose.msra.mxu0 0
        %1597 = vmatprep.subr.bf16.mxu0 0
        %1598 = vmatpush1.bf16.xpose.msra.mxu0 0
        %1599 = vmatprep.subr.bf16.mxu0 0
        %1600 = vmatpush1.bf16.xpose.msra.mxu0 0
        %1601 = vmatprep.subr.bf16.mxu0 0
        %1602 = vmatpush1.bf16.xpose.msra.mxu0 0
        %1603 = vmatprep.subr.bf16.mxu0 0
        %1604 = vmatpush1.bf16.xpose.msra.mxu0 0
        %1605 = vmatprep.subr.bf16.mxu0 0
        %1606 = vmatpush1.bf16.xpose.msra.mxu0 0
        %1607 = vmatprep.subr.bf16.mxu0 0
        %1608 = vmatpush1.bf16.xpose.msra.mxu0 0
        %1609 = vmatprep.subr.bf16.mxu0 0
        %1610 = vmatpush1.bf16.xpose.msra.mxu0 0
        %1611 = vmatprep.subr.bf16.mxu0 0
        %1612 = vmatpush1.bf16.xpose.msra.mxu0 0
        %1613 = vmatprep.subr.bf16.mxu0 0
        %1614 = vmatpush1.bf16.xpose.msra.mxu0 0
        %1615 = vmatprep.subr.bf16.mxu0 0
        %1616 = vmatpush1.bf16.xpose.msra.mxu0 0
        %1617 = vmatprep.subr.bf16.mxu0 0
        %1618 = vmatpush1.bf16.xpose.msra.mxu0 0
        %1619 = vmatprep.mubr.bf16.mxu0 0
        %1620 = vmatmul.mubr.bf16.gmra.mrb[0].mxu0 %v1579
        %v1621 = vpop.f32.mrb[0].mxu0
        %v1622 = vadd.f32 0.0, %v1621
        %v1623 = vpop.f32.mrb[0].mxu0
        %v1624 = vpop.f32.mrb[0].mxu0
        %v1625 = vadd.f32 0.0, %v1624
        %v1626 = vpop.f32.mrb[0].mxu0
        %1627 = vmatprep.mubr.bf16.mxu0 0
        %1628 = vmatmul.mubr.bf16.gmra.mrb[0].mxu0 %v1582
        %v1629 = vpop.f32.mrb[0].mxu0
        %v1630 = vadd.f32 0.0, %v1629
        %v1631 = vpop.f32.mrb[0].mxu0
        %v1632 = vpop.f32.mrb[0].mxu0
        %v1633 = vadd.f32 0.0, %v1632
        %v1634 = vpop.f32.mrb[0].mxu0
        %1635 = vdwg.mxu0
        %1636 = vxpose.xlu0.b32.start [1/16] %v1448, 128
        %1637 = vxpose.xlu0.b32.cont [2/16] %v1451, 128
        %1638 = vxpose.xlu0.b32.cont [3/16] %v1456, 128
        %1639 = vxpose.xlu0.b32.cont [4/16] %v1459, 128
        %1640 = vxpose.xlu0.b32.cont [5/16] 0.0, 128
        %1641 = vxpose.xlu0.b32.cont [6/16] 0.0, 128
        %1642 = vxpose.xlu0.b32.cont [7/16] 0.0, 128
        %1643 = vxpose.xlu0.b32.cont [8/16] 0.0, 128
        %1644 = vxpose.xlu0.b32.cont [9/16] 0.0, 128
        %1645 = vxpose.xlu0.b32.cont [10/16] 0.0, 128
        %1646 = vxpose.xlu0.b32.cont [11/16] 0.0, 128
        %1647 = vxpose.xlu0.b32.cont [12/16] 0.0, 128
        %1648 = vxpose.xlu0.b32.cont [13/16] 0.0, 128
        %1649 = vxpose.xlu0.b32.cont [14/16] 0.0, 128
        %1650 = vxpose.xlu0.b32.cont [15/16] 0.0, 128
        %1651 = vxpose.xlu0.b32.end [16/16] 0.0, 128
        %v1652 = vpop.trf.xlu0
        %v1653 = vpop.trf.xlu0
        %v1654 = vpop.trf.xlu0
        %v1655 = vpop.trf.xlu0
        %v1656 = vpop.trf.xlu0
        %v1657 = vpop.trf.xlu0
        %v1658 = vpop.trf.xlu0
        %v1659 = vpop.trf.xlu0
        %v1660 = vpop.trf.xlu0
        %v1661 = vpop.trf.xlu0
        %v1662 = vpop.trf.xlu0
        %v1663 = vpop.trf.xlu0
        %v1664 = vpop.trf.xlu0
        %v1665 = vpop.trf.xlu0
        %v1666 = vpop.trf.xlu0
        %v1667 = vpop.trf.xlu0
        %1668 = vxpose.xlu0.b32.start [1/16] %v1506, 128
        %1669 = vxpose.xlu0.b32.cont [2/16] %v1509, 128
        %1670 = vxpose.xlu0.b32.cont [3/16] %v1514, 128
        %1671 = vxpose.xlu0.b32.cont [4/16] %v1517, 128
        %1672 = vxpose.xlu0.b32.cont [5/16] 0.0, 128
        %1673 = vxpose.xlu0.b32.cont [6/16] 0.0, 128
        %1674 = vxpose.xlu0.b32.cont [7/16] 0.0, 128
        %1675 = vxpose.xlu0.b32.cont [8/16] 0.0, 128
        %1676 = vxpose.xlu0.b32.cont [9/16] 0.0, 128
        %1677 = vxpose.xlu0.b32.cont [10/16] 0.0, 128
        %1678 = vxpose.xlu0.b32.cont [11/16] 0.0, 128
        %1679 = vxpose.xlu0.b32.cont [12/16] 0.0, 128
        %1680 = vxpose.xlu0.b32.cont [13/16] 0.0, 128
        %1681 = vxpose.xlu0.b32.cont [14/16] 0.0, 128
        %1682 = vxpose.xlu0.b32.cont [15/16] 0.0, 128
        %1683 = vxpose.xlu0.b32.end [16/16] 0.0, 128
        %v1684 = vpop.trf.xlu0
        %v1685 = vpop.trf.xlu0
        %v1686 = vpop.trf.xlu0
        %v1687 = vpop.trf.xlu0
        %v1688 = vpop.trf.xlu0
        %v1689 = vpop.trf.xlu0
        %v1690 = vpop.trf.xlu0
        %v1691 = vpop.trf.xlu0
        %v1692 = vpop.trf.xlu0
        %v1693 = vpop.trf.xlu0
        %v1694 = vpop.trf.xlu0
        %v1695 = vpop.trf.xlu0
        %v1696 = vpop.trf.xlu0
        %v1697 = vpop.trf.xlu0
        %v1698 = vpop.trf.xlu0
        %v1699 = vpop.trf.xlu0
        %1700 = vxpose.xlu0.b32.start [1/16] %v1564, 128
        %1701 = vxpose.xlu0.b32.cont [2/16] %v1567, 128
        %1702 = vxpose.xlu0.b32.cont [3/16] %v1572, 128
        %1703 = vxpose.xlu0.b32.cont [4/16] %v1575, 128
        %1704 = vxpose.xlu0.b32.cont [5/16] 0.0, 128
        %1705 = vxpose.xlu0.b32.cont [6/16] 0.0, 128
        %1706 = vxpose.xlu0.b32.cont [7/16] 0.0, 128
        %1707 = vxpose.xlu0.b32.cont [8/16] 0.0, 128
        %1708 = vxpose.xlu0.b32.cont [9/16] 0.0, 128
        %1709 = vxpose.xlu0.b32.cont [10/16] 0.0, 128
        %1710 = vxpose.xlu0.b32.cont [11/16] 0.0, 128
        %1711 = vxpose.xlu0.b32.cont [12/16] 0.0, 128
        %1712 = vxpose.xlu0.b32.cont [13/16] 0.0, 128
        %1713 = vxpose.xlu0.b32.cont [14/16] 0.0, 128
        %1714 = vxpose.xlu0.b32.cont [15/16] 0.0, 128
        %1715 = vxpose.xlu0.b32.end [16/16] 0.0, 128
        %v1716 = vpop.trf.xlu0
        %v1717 = vpop.trf.xlu0
        %v1718 = vpop.trf.xlu0
        %v1719 = vpop.trf.xlu0
        %v1720 = vpop.trf.xlu0
        %v1721 = vpop.trf.xlu0
        %v1722 = vpop.trf.xlu0
        %v1723 = vpop.trf.xlu0
        %v1724 = vpop.trf.xlu0
        %v1725 = vpop.trf.xlu0
        %v1726 = vpop.trf.xlu0
        %v1727 = vpop.trf.xlu0
        %v1728 = vpop.trf.xlu0
        %v1729 = vpop.trf.xlu0
        %v1730 = vpop.trf.xlu0
        %v1731 = vpop.trf.xlu0
        %1732 = vxpose.xlu0.b32.start [1/16] %v1622, 128
        %1733 = vxpose.xlu0.b32.cont [2/16] %v1625, 128
        %1734 = vxpose.xlu0.b32.cont [3/16] %v1630, 128
        %1735 = vxpose.xlu0.b32.cont [4/16] %v1633, 128
        %1736 = vxpose.xlu0.b32.cont [5/16] 0.0, 128
        %1737 = vxpose.xlu0.b32.cont [6/16] 0.0, 128
        %1738 = vxpose.xlu0.b32.cont [7/16] 0.0, 128
        %1739 = vxpose.xlu0.b32.cont [8/16] 0.0, 128
        %1740 = vxpose.xlu0.b32.cont [9/16] 0.0, 128
        %1741 = vxpose.xlu0.b32.cont [10/16] 0.0, 128
        %1742 = vxpose.xlu0.b32.cont [11/16] 0.0, 128
        %1743 = vxpose.xlu0.b32.cont [12/16] 0.0, 128
        %1744 = vxpose.xlu0.b32.cont [13/16] 0.0, 128
        %1745 = vxpose.xlu0.b32.cont [14/16] 0.0, 128
        %1746 = vxpose.xlu0.b32.cont [15/16] 0.0, 128
        %1747 = vxpose.xlu0.b32.end [16/16] 0.0, 128
        %v1748 = vpop.trf.xlu0
        %v1749 = vpop.trf.xlu0
        %v1750 = vpop.trf.xlu0
        %v1751 = vpop.trf.xlu0
        %v1752 = vpop.trf.xlu0
        %v1753 = vpop.trf.xlu0
        %v1754 = vpop.trf.xlu0
        %v1755 = vpop.trf.xlu0
        %v1756 = vpop.trf.xlu0
        %v1757 = vpop.trf.xlu0
        %v1758 = vpop.trf.xlu0
        %v1759 = vpop.trf.xlu0
        %v1760 = vpop.trf.xlu0
        %v1761 = vpop.trf.xlu0
        %v1762 = vpop.trf.xlu0
        %v1763 = vpop.trf.xlu0
        %v1764 = vcombine.low %v1652, %v1716
        %v1765 = vcombine.high %v1652, %v1716
        %v1767 = vunpack.c.l.s4 1983009808
        %v1768 = vunpack.c.0.s8 %v1767
        %v1769 = vlaneseq
        %v1770 = vshrl.u32 %v1769, 7
        %v1771 = vsub.s32 %v1768, %v1770
        %v1772 = vrot.slane %v1764, %v1771
        %v1774 = vunpack.c.l.s4 1983009808
        %v1775 = vunpack.c.0.s8 %v1774
        %v1776 = vlaneseq
        %v1777 = vshrl.u32 %v1776, 7
        %v1778 = vsub.s32 %v1775, %v1777
        %v1779 = vrot.slane %v1765, %v1778
        %v1780 = vcombine.low %v1684, %v1748
        %v1781 = vcombine.high %v1684, %v1748
        %v1783 = vunpack.c.l.s4 1983009808
        %v1784 = vunpack.c.0.s8 %v1783
        %v1785 = vlaneseq
        %v1786 = vshrl.u32 %v1785, 7
        %v1787 = vsub.s32 %v1784, %v1786
        %v1788 = vrot.slane %v1780, %v1787
        %v1790 = vunpack.c.l.s4 1983009808
        %v1791 = vunpack.c.0.s8 %v1790
        %v1792 = vlaneseq
        %v1793 = vshrl.u32 %v1792, 7
        %v1794 = vsub.s32 %v1791, %v1793
        %v1795 = vrot.slane %v1781, %v1794
        %v1796 = vcombine.low %v1772, %v1788
        %v1797 = vcombine.high %v1772, %v1788
        %v1799 = vunpack.c.l.s4 1934713408
        %v1800 = vunpack.c.0.s8 %v1799
        %v1801 = vlaneseq
        %v1802 = vshrl.u32 %v1801, 7
        %v1803 = vsub.s32 %v1800, %v1802
        %v1804 = vrot.slane %v1796, %v1803
        %v1806 = vunpack.c.l.s4 1934713408
        %v1807 = vunpack.c.0.s8 %v1806
        %v1808 = vlaneseq
        %v1809 = vshrl.u32 %v1808, 7
        %v1810 = vsub.s32 %v1807, %v1809
        %v1811 = vrot.slane %v1797, %v1810
        %v1812 = vcombine.low %v1779, %v1795
        %v1813 = vcombine.high %v1779, %v1795
        %v1815 = vunpack.c.l.s4 1934713408
        %v1816 = vunpack.c.0.s8 %v1815
        %v1817 = vlaneseq
        %v1818 = vshrl.u32 %v1817, 7
        %v1819 = vsub.s32 %v1816, %v1818
        %v1820 = vrot.slane %v1812, %v1819
        %v1822 = vunpack.c.l.s4 1934713408
        %v1823 = vunpack.c.0.s8 %v1822
        %v1824 = vlaneseq
        %v1825 = vshrl.u32 %v1824, 7
        %v1826 = vsub.s32 %v1823, %v1825
        %v1827 = vrot.slane %v1813, %v1826
        %v1828 = vcombine.high %v1804, 0.0
        %v1829 = vcombine.high %v1811, 0.0
        %v1830 = vcombine.high %v1820, 0.0
        %v1831 = vcombine.high %v1827, 0.0
        %v1832 = vcombine.low %v1804, %v1811
        %v1834 = vunpack.c.l.s4 1983009808
        %v1835 = vunpack.c.0.s8 %v1834
        %v1836 = vlaneseq
        %v1837 = vshrl.u32 %v1836, 7
        %v1838 = vsub.s32 %v1835, %v1837
        %v1839 = vrot.slane %v1832, %v1838
        %v1840 = vcombine.low %v1828, %v1829
        %v1842 = vunpack.c.l.s4 1983009808
        %v1843 = vunpack.c.0.s8 %v1842
        %v1844 = vlaneseq
        %v1845 = vshrl.u32 %v1844, 7
        %v1846 = vsub.s32 %v1843, %v1845
        %v1847 = vrot.slane %v1840, %v1846
        %v1848 = vcombine.low %v1820, %v1827
        %v1850 = vunpack.c.l.s4 1983009808
        %v1851 = vunpack.c.0.s8 %v1850
        %v1852 = vlaneseq
        %v1853 = vshrl.u32 %v1852, 7
        %v1854 = vsub.s32 %v1851, %v1853
        %v1855 = vrot.slane %v1848, %v1854
        %v1856 = vcombine.low %v1830, %v1831
        %v1858 = vunpack.c.l.s4 1983009808
        %v1859 = vunpack.c.0.s8 %v1858
        %v1860 = vlaneseq
        %v1861 = vshrl.u32 %v1860, 7
        %v1862 = vsub.s32 %v1859, %v1861
        %v1863 = vrot.slane %v1856, %v1862
        %v1864 = vcombine.low %v1839, %v1847
        %v1865 = vcombine.high %v1839, %v1847
        %v1867 = vunpack.c.l.s4 1934713408
        %v1868 = vunpack.c.0.s8 %v1867
        %v1869 = vlaneseq
        %v1870 = vshrl.u32 %v1869, 7
        %v1871 = vsub.s32 %v1868, %v1870
        %v1872 = vrot.slane %v1864, %v1871
        %v1874 = vunpack.c.l.s4 1934713408
        %v1875 = vunpack.c.0.s8 %v1874
        %v1876 = vlaneseq
        %v1877 = vshrl.u32 %v1876, 7
        %v1878 = vsub.s32 %v1875, %v1877
        %v1879 = vrot.slane %v1865, %v1878
        %v1880 = vcombine.low %v1855, %v1863
        %v1881 = vcombine.high %v1855, %v1863
        %v1883 = vunpack.c.l.s4 1934713408
        %v1884 = vunpack.c.0.s8 %v1883
        %v1885 = vlaneseq
        %v1886 = vshrl.u32 %v1885, 7
        %v1887 = vsub.s32 %v1884, %v1886
        %v1888 = vrot.slane %v1880, %v1887
        %v1890 = vunpack.c.l.s4 1934713408
        %v1891 = vunpack.c.0.s8 %v1890
        %v1892 = vlaneseq
        %v1893 = vshrl.u32 %v1892, 7
        %v1894 = vsub.s32 %v1891, %v1893
        %v1895 = vrot.slane %v1881, %v1894
        %v1896 = vcombine.low %v1872, %v1888
        %v1897 = vcombine.high %v1872, %v1888
        %v1898 = vcombine.low %v1879, %v1895
        %v1899 = vcombine.high %v1879, %v1895
        %1901 = vrot.lane.b32.xlu0 %v1897, 32
        %v1902 = vpop.permute.xlu0 %1901
        %1905 = vrot.lane.b32.xlu0 %v1898, 64
        %v1906 = vpop.permute.xlu0 %1905
        %1909 = vrot.lane.b32.xlu0 %v1899, 96
        %v1910 = vpop.permute.xlu0 %1909
        %v1912 = vsel %vm1118, %v1896, %v1902
        %vm1913 = vcmask 523264
        %v1914 = vsel %vm1913, %v1912, %v1906
        %vm1915 = vcmask 785408
        %v1916 = vsel %vm1915, %v1914, %v1910
        %v1917 = vpack.c.bf16 %v1916, %v1916
        %v1918 = vld [vmem:[%s547] sm:$0xf]
        %v1919 = vld [vmem:[%s547 + $0x4] sm:$0xf]
        %v1920 = vld [vmem:[%s547 + $0x8] sm:$0xf]
        %v1921 = vld [vmem:[%s547 + $0xc] sm:$0xf]
        %v1922 = vld [vmem:[%s547 + $0x10] sm:$0xf]
        %v1923 = vld [vmem:[%s547 + $0x14] sm:$0xf]
        %v1924 = vld [vmem:[%s547 + $0x18] sm:$0xf]
        %v1925 = vld [vmem:[%s547 + $0x1c] sm:$0xf]
        %v1926 = vld [vmem:[%s547 + $0x20] sm:$0xf]
        %v1927 = vld [vmem:[%s547 + $0x24] sm:$0xf]
        %v1928 = vld [vmem:[%s547 + $0x28] sm:$0xf]
        %v1929 = vld [vmem:[%s547 + $0x2c] sm:$0xf]
        %v1930 = vld [vmem:[%s547 + $0x30] sm:$0xf]
        %v1931 = vld [vmem:[%s547 + $0x34] sm:$0xf]
        %v1932 = vld [vmem:[%s547 + $0x38] sm:$0xf]
        %v1933 = vld [vmem:[%s547 + $0x3c] sm:$0xf]
        %v1934 = vlaneseq
        %v1935 = vshrl.u32 %v1934, 7
        %v1936 = vsub.s32 0, %v1935
        %v1937 = vrot.slane %v764, %v1936
        %v1954 = vunpack.c.l.b16 %v1918
        %v1955 = vunpack.c.l.b16 %v1919
        %v1956 = vunpack.c.l.b16 %v1920
        %v1957 = vunpack.c.l.b16 %v1921
        %v1958 = vunpack.c.l.b16 %v1922
        %v1959 = vunpack.c.l.b16 %v1923
        %v1960 = vunpack.c.l.b16 %v1924
        %v1961 = vunpack.c.l.b16 %v1925
        %v1962 = vunpack.c.l.b16 %v1926
        %v1963 = vunpack.c.l.b16 %v1927
        %v1964 = vunpack.c.l.b16 %v1928
        %v1965 = vunpack.c.l.b16 %v1929
        %v1966 = vunpack.c.l.b16 %v1930
        %v1967 = vunpack.c.l.b16 %v1931
        %v1968 = vunpack.c.l.b16 %v1932
        %v1969 = vunpack.c.l.b16 %v1933
        %v1970 = vpack.c.b16 %v1955, %v1954
        %v1971 = vpack.c.b16 %v1957, %v1956
        %v1972 = vpack.c.b16 %v1959, %v1958
        %v1973 = vpack.c.b16 %v1961, %v1960
        %v1974 = vpack.c.b16 %v1963, %v1962
        %v1975 = vpack.c.b16 %v1965, %v1964
        %v1976 = vpack.c.b16 %v1967, %v1966
        %v1977 = vpack.c.b16 %v1969, %v1968
        %1986 = vmatprep.subr.bf16.mxu0 0
        %1987 = vmatpush1.bf16.msra.mxu0 %v1970
        %1988 = vmatprep.subr.bf16.mxu0 0
        %1989 = vmatpush1.bf16.msra.mxu0 %v1971
        %1990 = vmatprep.subr.bf16.mxu0 0
        %1991 = vmatpush1.bf16.msra.mxu0 %v1972
        %1992 = vmatprep.subr.bf16.mxu0 0
        %1993 = vmatpush1.bf16.msra.mxu0 %v1973
        %1994 = vmatprep.subr.bf16.mxu0 0
        %1995 = vmatpush1.bf16.msra.mxu0 %v1974
        %1996 = vmatprep.subr.bf16.mxu0 0
        %1997 = vmatpush1.bf16.msra.mxu0 %v1975
        %1998 = vmatprep.subr.bf16.mxu0 0
        %1999 = vmatpush1.bf16.msra.mxu0 %v1976
        %2000 = vmatprep.subr.bf16.mxu0 0
        %2001 = vmatpush1.bf16.msra.mxu0 %v1977
        %2002 = vmatprep.subr.bf16.mxu0 0
        %2003 = vmatpush1.bf16.msra.mxu0 0
        %2004 = vmatprep.subr.bf16.mxu0 0
        %2005 = vmatpush1.bf16.msra.mxu0 0
        %2006 = vmatprep.subr.bf16.mxu0 0
        %2007 = vmatpush1.bf16.msra.mxu0 0
        %2008 = vmatprep.subr.bf16.mxu0 0
        %2009 = vmatpush1.bf16.msra.mxu0 0
        %2010 = vmatprep.subr.bf16.mxu0 0
        %2011 = vmatpush1.bf16.msra.mxu0 0
        %2012 = vmatprep.subr.bf16.mxu0 0
        %2013 = vmatpush1.bf16.msra.mxu0 0
        %2014 = vmatprep.subr.bf16.mxu0 0
        %2015 = vmatpush1.bf16.msra.mxu0 0
        %2016 = vmatprep.subr.bf16.mxu0 0
        %2017 = vmatpush1.bf16.msra.mxu0 0
        %2018 = vmatprep.mubr.bf16.mxu0 0
        %2019 = vmatmul.mubr.bf16.gmra.mrb[0].mxu0 %v1917
        %v2020 = vpop.f32.mrb[0].mxu0
        %v2021 = vadd.f32 %v1937, %v2020
        %v2022 = vpop.f32.mrb[0].mxu0
        %v2023 = vpop.f32.mrb[0].mxu0
        %v2024 = vpop.f32.mrb[0].mxu0
        %2025 = vdwg.mxu0
        %v2026 = vadd.f32 %v763, %v2021
        %2027 = vadd.xlane.f32.xlu0 %v2026
        %v2028 = vpop.xlane.xlu0 %2027
        %v2029 = vrcp.pop 128.0
        %v2030 = vmul.f32 %v2028, %v2029
        %v2031 = vsub.f32 %v2026, %v2030
        %v2032 = vmul.f32 %v2031, %v2031
        %2033 = vadd.xlane.f32.xlu0 %v2032
        %v2034 = vpop.xlane.xlu0 %2033
        %v2035 = vmul.f32 %v2034, %v2029
        %v2036 = vadd.f32 %v2035, 1e-05
        %v2037 = vrsqrt.pop %v2036
        %v2038 = vmul.f32 %v2031, %v2037
        %v2039 = vlaneseq
        %v2040 = vshrl.u32 %v2039, 7
        %v2041 = vsub.s32 2, %v2040
        %v2042 = vrot.slane %v764, %v2041
        %v2043 = vmul.f32 %v2038, %v2042
        %v2044 = vlaneseq
        %v2045 = vshrl.u32 %v2044, 7
        %v2046 = vsub.s32 3, %v2045
        %v2047 = vrot.slane %v764, %v2046
        %v2048 = vadd.f32 %v2043, %v2047
        %v2049 = vpack.c.bf16 %v2048, %v2048
        %v2050 = vld [vmem:[%s556] sm:$0xff]
        %v2051 = vld [vmem:[%s556 + $0x8] sm:$0xff]
        %v2052 = vld [vmem:[%s556 + $0x10] sm:$0xff]
        %v2053 = vld [vmem:[%s556 + $0x18] sm:$0xff]
        %v2054 = vld [vmem:[%s556 + $0x20] sm:$0xff]
        %v2055 = vld [vmem:[%s556 + $0x28] sm:$0xff]
        %v2056 = vld [vmem:[%s556 + $0x30] sm:$0xff]
        %v2057 = vld [vmem:[%s556 + $0x38] sm:$0xff]
        %v2058 = vld [vmem:[%s556 + $0x40] sm:$0xff]
        %v2059 = vld [vmem:[%s556 + $0x48] sm:$0xff]
        %v2060 = vld [vmem:[%s556 + $0x50] sm:$0xff]
        %v2061 = vld [vmem:[%s556 + $0x58] sm:$0xff]
        %v2062 = vld [vmem:[%s556 + $0x60] sm:$0xff]
        %v2063 = vld [vmem:[%s556 + $0x68] sm:$0xff]
        %v2064 = vld [vmem:[%s556 + $0x70] sm:$0xff]
        %v2065 = vld [vmem:[%s556 + $0x78] sm:$0xff]
        %v2066 = vld [vmem:[%s565] sm:$0x3]
        %v2068 = vlaneseq
        %v2069 = vshrl.u32 %v2068, 7
        %v2070 = vsub.s32 0, %v2069
        %v2071 = vrot.slane %v2066, %v2070
        %v2072 = vlaneseq
        %v2073 = vshrl.u32 %v2072, 7
        %v2074 = vsub.s32 1, %v2073
        %v2075 = vrot.slane %v2066, %v2074
        %v2094 = vunpack.c.l.b16 %v2050
        %v2095 = vunpack.c.h.b16 %v2050
        %v2096 = vunpack.c.l.b16 %v2051
        %v2097 = vunpack.c.h.b16 %v2051
        %v2098 = vunpack.c.l.b16 %v2052
        %v2099 = vunpack.c.h.b16 %v2052
        %v2100 = vunpack.c.l.b16 %v2053
        %v2101 = vunpack.c.h.b16 %v2053
        %v2102 = vunpack.c.l.b16 %v2054
        %v2103 = vunpack.c.h.b16 %v2054
        %v2104 = vunpack.c.l.b16 %v2055
        %v2105 = vunpack.c.h.b16 %v2055
        %v2106 = vunpack.c.l.b16 %v2056
        %v2107 = vunpack.c.h.b16 %v2056
        %v2108 = vunpack.c.l.b16 %v2057
        %v2109 = vunpack.c.h.b16 %v2057
        %v2110 = vunpack.c.l.b16 %v2058
        %v2111 = vunpack.c.h.b16 %v2058
        %v2112 = vunpack.c.l.b16 %v2059
        %v2113 = vunpack.c.h.b16 %v2059
        %v2114 = vunpack.c.l.b16 %v2060
        %v2115 = vunpack.c.h.b16 %v2060
        %v2116 = vunpack.c.l.b16 %v2061
        %v2117 = vunpack.c.h.b16 %v2061
        %v2118 = vunpack.c.l.b16 %v2062
        %v2119 = vunpack.c.h.b16 %v2062
        %v2120 = vunpack.c.l.b16 %v2063
        %v2121 = vunpack.c.h.b16 %v2063
        %v2122 = vunpack.c.l.b16 %v2064
        %v2123 = vunpack.c.h.b16 %v2064
        %v2124 = vunpack.c.l.b16 %v2065
        %v2125 = vunpack.c.h.b16 %v2065
        %v2126 = vpack.c.b16 %v2096, %v2094
        %v2127 = vpack.c.b16 %v2097, %v2095
        %v2128 = vpack.c.b16 %v2100, %v2098
        %v2129 = vpack.c.b16 %v2101, %v2099
        %v2130 = vpack.c.b16 %v2104, %v2102
        %v2131 = vpack.c.b16 %v2105, %v2103
        %v2132 = vpack.c.b16 %v2108, %v2106
        %v2133 = vpack.c.b16 %v2109, %v2107
        %v2134 = vpack.c.b16 %v2112, %v2110
        %v2135 = vpack.c.b16 %v2113, %v2111
        %v2136 = vpack.c.b16 %v2116, %v2114
        %v2137 = vpack.c.b16 %v2117, %v2115
        %v2138 = vpack.c.b16 %v2120, %v2118
        %v2139 = vpack.c.b16 %v2121, %v2119
        %v2140 = vpack.c.b16 %v2124, %v2122
        %v2141 = vpack.c.b16 %v2125, %v2123
        %2158 = vmatprep.subr.bf16.mxu0 %v2127
        %2159 = vmatpush1.bf16.msra.mxu0 %v2126
        %2160 = vmatprep.subr.bf16.mxu0 %v2129
        %2161 = vmatpush1.bf16.msra.mxu0 %v2128
        %2162 = vmatprep.subr.bf16.mxu0 %v2131
        %2163 = vmatpush1.bf16.msra.mxu0 %v2130
        %2164 = vmatprep.subr.bf16.mxu0 %v2133
        %2165 = vmatpush1.bf16.msra.mxu0 %v2132
        %2166 = vmatprep.subr.bf16.mxu0 %v2135
        %2167 = vmatpush1.bf16.msra.mxu0 %v2134
        %2168 = vmatprep.subr.bf16.mxu0 %v2137
        %2169 = vmatpush1.bf16.msra.mxu0 %v2136
        %2170 = vmatprep.subr.bf16.mxu0 %v2139
        %2171 = vmatpush1.bf16.msra.mxu0 %v2138
        %2172 = vmatprep.subr.bf16.mxu0 %v2141
        %2173 = vmatpush1.bf16.msra.mxu0 %v2140
        %2174 = vmatprep.subr.bf16.mxu0 0
        %2175 = vmatpush1.bf16.msra.mxu0 0
        %2176 = vmatprep.subr.bf16.mxu0 0
        %2177 = vmatpush1.bf16.msra.mxu0 0
        %2178 = vmatprep.subr.bf16.mxu0 0
        %2179 = vmatpush1.bf16.msra.mxu0 0
        %2180 = vmatprep.subr.bf16.mxu0 0
        %2181 = vmatpush1.bf16.msra.mxu0 0
        %2182 = vmatprep.subr.bf16.mxu0 0
        %2183 = vmatpush1.bf16.msra.mxu0 0
        %2184 = vmatprep.subr.bf16.mxu0 0
        %2185 = vmatpush1.bf16.msra.mxu0 0
        %2186 = vmatprep.subr.bf16.mxu0 0
        %2187 = vmatpush1.bf16.msra.mxu0 0
        %2188 = vmatprep.subr.bf16.mxu0 0
        %2189 = vmatpush1.bf16.msra.mxu0 0
        %2190 = vmatprep.mubr.bf16.mxu0 0
        %2191 = vmatmul.mubr.bf16.gmra.mrb[0].mxu0 %v2049
        %v2192 = vpop.f32.mrb[0].mxu0
        %v2193 = vadd.f32 %v2071, %v2192
        %v2194 = vpop.f32.mrb[0].mxu0
        %v2195 = vadd.f32 %v2075, %v2194
        %v2196 = vpop.f32.mrb[0].mxu0
        %v2197 = vpop.f32.mrb[0].mxu0
        %2198 = vdwg.mxu0
        %v2199 = vmax.f32 %v2193, 0.0
        %v2200 = vmax.f32 %v2195, 0.0
        %v2201 = vpack.c.bf16 %v2199, %v2199
        %v2202 = vpack.c.bf16 %v2200, %v2200
        %v2203 = vld [vmem:[%s574] sm:$0xf]
        %v2204 = vld [vmem:[%s574 + $0x4] sm:$0xf]
        %v2205 = vld [vmem:[%s574 + $0x8] sm:$0xf]
        %v2206 = vld [vmem:[%s574 + $0xc] sm:$0xf]
        %v2207 = vld [vmem:[%s574 + $0x10] sm:$0xf]
        %v2208 = vld [vmem:[%s574 + $0x14] sm:$0xf]
        %v2209 = vld [vmem:[%s574 + $0x18] sm:$0xf]
        %v2210 = vld [vmem:[%s574 + $0x1c] sm:$0xf]
        %v2211 = vld [vmem:[%s574 + $0x20] sm:$0xf]
        %v2212 = vld [vmem:[%s574 + $0x24] sm:$0xf]
        %v2213 = vld [vmem:[%s574 + $0x28] sm:$0xf]
        %v2214 = vld [vmem:[%s574 + $0x2c] sm:$0xf]
        %v2215 = vld [vmem:[%s574 + $0x30] sm:$0xf]
        %v2216 = vld [vmem:[%s574 + $0x34] sm:$0xf]
        %v2217 = vld [vmem:[%s574 + $0x38] sm:$0xf]
        %v2218 = vld [vmem:[%s574 + $0x3c] sm:$0xf]
        %v2219 = vld [vmem:[%s574 + $0x40] sm:$0xf]
        %v2220 = vld [vmem:[%s574 + $0x44] sm:$0xf]
        %v2221 = vld [vmem:[%s574 + $0x48] sm:$0xf]
        %v2222 = vld [vmem:[%s574 + $0x4c] sm:$0xf]
        %v2223 = vld [vmem:[%s574 + $0x50] sm:$0xf]
        %v2224 = vld [vmem:[%s574 + $0x54] sm:$0xf]
        %v2225 = vld [vmem:[%s574 + $0x58] sm:$0xf]
        %v2226 = vld [vmem:[%s574 + $0x5c] sm:$0xf]
        %v2227 = vld [vmem:[%s574 + $0x60] sm:$0xf]
        %v2228 = vld [vmem:[%s574 + $0x64] sm:$0xf]
        %v2229 = vld [vmem:[%s574 + $0x68] sm:$0xf]
        %v2230 = vld [vmem:[%s574 + $0x6c] sm:$0xf]
        %v2231 = vld [vmem:[%s574 + $0x70] sm:$0xf]
        %v2232 = vld [vmem:[%s574 + $0x74] sm:$0xf]
        %v2233 = vld [vmem:[%s574 + $0x78] sm:$0xf]
        %v2234 = vld [vmem:[%s574 + $0x7c] sm:$0xf]
        %v2235 = vlaneseq
        %v2236 = vshrl.u32 %v2235, 7
        %v2237 = vsub.s32 1, %v2236
        %v2238 = vrot.slane %v764, %v2237
        %v2271 = vunpack.c.l.b16 %v2203
        %v2272 = vunpack.c.l.b16 %v2204
        %v2273 = vunpack.c.l.b16 %v2205
        %v2274 = vunpack.c.l.b16 %v2206
        %v2275 = vunpack.c.l.b16 %v2207
        %v2276 = vunpack.c.l.b16 %v2208
        %v2277 = vunpack.c.l.b16 %v2209
        %v2278 = vunpack.c.l.b16 %v2210
        %v2279 = vunpack.c.l.b16 %v2211
        %v2280 = vunpack.c.l.b16 %v2212
        %v2281 = vunpack.c.l.b16 %v2213
        %v2282 = vunpack.c.l.b16 %v2214
        %v2283 = vunpack.c.l.b16 %v2215
        %v2284 = vunpack.c.l.b16 %v2216
        %v2285 = vunpack.c.l.b16 %v2217
        %v2286 = vunpack.c.l.b16 %v2218
        %v2287 = vunpack.c.l.b16 %v2219
        %v2288 = vunpack.c.l.b16 %v2220
        %v2289 = vunpack.c.l.b16 %v2221
        %v2290 = vunpack.c.l.b16 %v2222
        %v2291 = vunpack.c.l.b16 %v2223
        %v2292 = vunpack.c.l.b16 %v2224
        %v2293 = vunpack.c.l.b16 %v2225
        %v2294 = vunpack.c.l.b16 %v2226
        %v2295 = vunpack.c.l.b16 %v2227
        %v2296 = vunpack.c.l.b16 %v2228
        %v2297 = vunpack.c.l.b16 %v2229
        %v2298 = vunpack.c.l.b16 %v2230
        %v2299 = vunpack.c.l.b16 %v2231
        %v2300 = vunpack.c.l.b16 %v2232
        %v2301 = vunpack.c.l.b16 %v2233
        %v2302 = vunpack.c.l.b16 %v2234
        %v2303 = vpack.c.b16 %v2272, %v2271
        %v2304 = vpack.c.b16 %v2274, %v2273
        %v2305 = vpack.c.b16 %v2276, %v2275
        %v2306 = vpack.c.b16 %v2278, %v2277
        %v2307 = vpack.c.b16 %v2280, %v2279
        %v2308 = vpack.c.b16 %v2282, %v2281
        %v2309 = vpack.c.b16 %v2284, %v2283
        %v2310 = vpack.c.b16 %v2286, %v2285
        %v2311 = vpack.c.b16 %v2288, %v2287
        %v2312 = vpack.c.b16 %v2290, %v2289
        %v2313 = vpack.c.b16 %v2292, %v2291
        %v2314 = vpack.c.b16 %v2294, %v2293
        %v2315 = vpack.c.b16 %v2296, %v2295
        %v2316 = vpack.c.b16 %v2298, %v2297
        %v2317 = vpack.c.b16 %v2300, %v2299
        %v2318 = vpack.c.b16 %v2302, %v2301
        %2335 = vmatprep.subr.bf16.mxu0 0
        %2336 = vmatpush1.bf16.msra.mxu0 %v2303
        %2337 = vmatprep.subr.bf16.mxu0 0
        %2338 = vmatpush1.bf16.msra.mxu0 %v2304
        %2339 = vmatprep.subr.bf16.mxu0 0
        %2340 = vmatpush1.bf16.msra.mxu0 %v2305
        %2341 = vmatprep.subr.bf16.mxu0 0
        %2342 = vmatpush1.bf16.msra.mxu0 %v2306
        %2343 = vmatprep.subr.bf16.mxu0 0
        %2344 = vmatpush1.bf16.msra.mxu0 %v2307
        %2345 = vmatprep.subr.bf16.mxu0 0
        %2346 = vmatpush1.bf16.msra.mxu0 %v2308
        %2347 = vmatprep.subr.bf16.mxu0 0
        %2348 = vmatpush1.bf16.msra.mxu0 %v2309
        %2349 = vmatprep.subr.bf16.mxu0 0
        %2350 = vmatpush1.bf16.msra.mxu0 %v2310
        %2351 = vmatprep.subr.bf16.mxu0 0
        %2352 = vmatpush1.bf16.msra.mxu0 %v2311
        %2353 = vmatprep.subr.bf16.mxu0 0
        %2354 = vmatpush1.bf16.msra.mxu0 %v2312
        %2355 = vmatprep.subr.bf16.mxu0 0
        %2356 = vmatpush1.bf16.msra.mxu0 %v2313
        %2357 = vmatprep.subr.bf16.mxu0 0
        %2358 = vmatpush1.bf16.msra.mxu0 %v2314
        %2359 = vmatprep.subr.bf16.mxu0 0
        %2360 = vmatpush1.bf16.msra.mxu0 %v2315
        %2361 = vmatprep.subr.bf16.mxu0 0
        %2362 = vmatpush1.bf16.msra.mxu0 %v2316
        %2363 = vmatprep.subr.bf16.mxu0 0
        %2364 = vmatpush1.bf16.msra.mxu0 %v2317
        %2365 = vmatprep.subr.bf16.mxu0 0
        %2366 = vmatpush1.bf16.msra.mxu0 %v2318
        %2367 = vmatprep.mubr.bf16.mxu0 %v2202
        %2368 = vmatmul.mubr.bf16.gmra.mrb[0].mxu0 %v2201
        %v2369 = vpop.f32.mrb[0].mxu0
        %v2370 = vadd.f32 %v2238, %v2369
        %v2371 = vpop.f32.mrb[0].mxu0
        %v2372 = vpop.f32.mrb[0].mxu0
        %v2373 = vpop.f32.mrb[0].mxu0
        %2374 = vdwg.mxu0
        %v2375 = vadd.f32 %v2048, %v2370
        %2376 = vadd.xlane.f32.xlu0 %v2375
        %v2377 = vpop.xlane.xlu0 %2376
        %v2378 = vmul.f32 %v2377, %v2029
        %v2379 = vsub.f32 %v2375, %v2378
        %v2380 = vmul.f32 %v2379, %v2379
        %2381 = vadd.xlane.f32.xlu0 %v2380
        %v2382 = vpop.xlane.xlu0 %2381
        %v2383 = vmul.f32 %v2382, %v2029
        %v2384 = vadd.f32 %v2383, 1e-05
        %v2385 = vrsqrt.pop %v2384
        %v2386 = vmul.f32 %v2379, %v2385
        %v2387 = vlaneseq
        %v2388 = vshrl.u32 %v2387, 7
        %v2389 = vsub.s32 4, %v2388
        %v2390 = vrot.slane %v764, %v2389
        %v2391 = vmul.f32 %v2386, %v2390
        %v2392 = vlaneseq
        %v2393 = vshrl.u32 %v2392, 7
        %v2394 = vsub.s32 5, %v2393
        %v2395 = vrot.slane %v764, %v2394
        %v2396 = vadd.f32 %v2391, %v2395
        %2397 = vst [vmem:[#allocation2] sm:$0xff] %v2396
        %p2398 = scmp.eq.s32.totalorder %s26, 1
        // Predicated region
        $region105: #{tpu_custom_call.1} parent=67 // pred_check
          %p2399 = pneg %p2398
        $region106: #{tpu_custom_call.1} parent=67 // pred_check_branch
          %2401 = sbr.rel (%p2399) target = $region108
        $region107: #{tpu_custom_call.1} parent=67 // pred_region
          %v2402 = vpack.c.bf16 %v2396, %v2396
          %v2403 = vld [vmem:[%s10] sm:$0xf]
          %v2404 = vld [vmem:[%s10 + $0x4] sm:$0xf]
          %v2405 = vld [vmem:[%s10 + $0x8] sm:$0xf]
          %v2406 = vld [vmem:[%s10 + $0xc] sm:$0xf]
          %v2407 = vld [vmem:[%s10 + $0x10] sm:$0xf]
          %v2408 = vld [vmem:[%s10 + $0x14] sm:$0xf]
          %v2409 = vld [vmem:[%s10 + $0x18] sm:$0xf]
          %v2410 = vld [vmem:[%s10 + $0x1c] sm:$0xf]
          %v2411 = vld [vmem:[%s10 + $0x20] sm:$0xf]
          %v2412 = vld [vmem:[%s10 + $0x24] sm:$0xf]
          %v2413 = vld [vmem:[%s10 + $0x28] sm:$0xf]
          %v2414 = vld [vmem:[%s10 + $0x2c] sm:$0xf]
          %v2415 = vld [vmem:[%s10 + $0x30] sm:$0xf]
          %v2416 = vld [vmem:[%s10 + $0x34] sm:$0xf]
          %v2417 = vld [vmem:[%s10 + $0x38] sm:$0xf]
          %v2418 = vld [vmem:[%s10 + $0x3c] sm:$0xf]
          %v2419 = vld [vmem:[%s11] sm:$0x1]
          %v2421 = vlaneseq
          %v2422 = vshrl.u32 %v2421, 7
          %v2423 = vsub.s32 0, %v2422
          %v2424 = vrot.slane %v2419, %v2423
          %v2442 = vunpack.c.l.b16 %v2403
          %v2443 = vunpack.c.l.b16 %v2404
          %v2444 = vunpack.c.l.b16 %v2405
          %v2445 = vunpack.c.l.b16 %v2406
          %v2446 = vunpack.c.l.b16 %v2407
          %v2447 = vunpack.c.l.b16 %v2408
          %v2448 = vunpack.c.l.b16 %v2409
          %v2449 = vunpack.c.l.b16 %v2410
          %v2450 = vunpack.c.l.b16 %v2411
          %v2451 = vunpack.c.l.b16 %v2412
          %v2452 = vunpack.c.l.b16 %v2413
          %v2453 = vunpack.c.l.b16 %v2414
          %v2454 = vunpack.c.l.b16 %v2415
          %v2455 = vunpack.c.l.b16 %v2416
          %v2456 = vunpack.c.l.b16 %v2417
          %v2457 = vunpack.c.l.b16 %v2418
          %v2458 = vpack.c.b16 %v2443, %v2442
          %v2459 = vpack.c.b16 %v2445, %v2444
          %v2460 = vpack.c.b16 %v2447, %v2446
          %v2461 = vpack.c.b16 %v2449, %v2448
          %v2462 = vpack.c.b16 %v2451, %v2450
          %v2463 = vpack.c.b16 %v2453, %v2452
          %v2464 = vpack.c.b16 %v2455, %v2454
          %v2465 = vpack.c.b16 %v2457, %v2456
          %2474 = vmatprep.subr.bf16.mxu0 0
          %2475 = vmatpush1.bf16.msra.mxu0 %v2458
          %2476 = vmatprep.subr.bf16.mxu0 0
          %2477 = vmatpush1.bf16.msra.mxu0 %v2459
          %2478 = vmatprep.subr.bf16.mxu0 0
          %2479 = vmatpush1.bf16.msra.mxu0 %v2460
          %2480 = vmatprep.subr.bf16.mxu0 0
          %2481 = vmatpush1.bf16.msra.mxu0 %v2461
          %2482 = vmatprep.subr.bf16.mxu0 0
          %2483 = vmatpush1.bf16.msra.mxu0 %v2462
          %2484 = vmatprep.subr.bf16.mxu0 0
          %2485 = vmatpush1.bf16.msra.mxu0 %v2463
          %2486 = vmatprep.subr.bf16.mxu0 0
          %2487 = vmatpush1.bf16.msra.mxu0 %v2464
          %2488 = vmatprep.subr.bf16.mxu0 0
          %2489 = vmatpush1.bf16.msra.mxu0 %v2465
          %2490 = vmatprep.subr.bf16.mxu0 0
          %2491 = vmatpush1.bf16.msra.mxu0 0
          %2492 = vmatprep.subr.bf16.mxu0 0
          %2493 = vmatpush1.bf16.msra.mxu0 0
          %2494 = vmatprep.subr.bf16.mxu0 0
          %2495 = vmatpush1.bf16.msra.mxu0 0
          %2496 = vmatprep.subr.bf16.mxu0 0
          %2497 = vmatpush1.bf16.msra.mxu0 0
          %2498 = vmatprep.subr.bf16.mxu0 0
          %2499 = vmatpush1.bf16.msra.mxu0 0
          %2500 = vmatprep.subr.bf16.mxu0 0
          %2501 = vmatpush1.bf16.msra.mxu0 0
          %2502 = vmatprep.subr.bf16.mxu0 0
          %2503 = vmatpush1.bf16.msra.mxu0 0
          %2504 = vmatprep.subr.bf16.mxu0 0
          %2505 = vmatpush1.bf16.msra.mxu0 0
          %2506 = vmatprep.mubr.bf16.mxu0 0
          %2507 = vmatmul.mubr.bf16.gmra.mrb[0].mxu0 %v2402
          %v2508 = vpop.f32.mrb[0].mxu0
          %v2509 = vadd.f32 %v2424, %v2508
          %v2510 = vpop.f32.mrb[0].mxu0
          %v2511 = vpop.f32.mrb[0].mxu0
          %v2512 = vpop.f32.mrb[0].mxu0
          %2513 = vdwg.mxu0
          %2514 = vst [vmem:[#allocation14] sm:$0xff] %v2509
        $region108: #{tpu_custom_call.1} parent=67 // pred_fallthru
          _
        // Predicated region
        $region109: #{tpu_custom_call.1} parent=67 // pred_check
          %p2515 = pneg %p326
        $region110: #{tpu_custom_call.1} parent=67 // pred_check_branch
          %2517 = sbr.rel (%p2515) target = $region112
        $region111: #{tpu_custom_call.1} parent=67 // pred_region
          %s2519 = ssub.s32 128, 128
          %2520 = vsyncadd [#allocation5], %s2519
          %s2522 = sshll.u32 [#allocation14], 4
          %s2523 = int_to_ptr.vmem [resolvable:$true] %s2522
          %2525 = dma.vmem_to_hbm [thread:$0]  %s2523, 128, %s12, [#allocation5]
        $region112: #{tpu_custom_call.1} parent=67 // pred_fallthru
          _
        // Predicated region
        $region113: #{tpu_custom_call.1} parent=67 // pred_check
          %p2526 = pneg %p326
        $region114: #{tpu_custom_call.1} parent=67 // pred_check_branch
          %2528 = sbr.rel (%p2526) target = $region116
        $region115: #{tpu_custom_call.1} parent=67 // pred_region
          %2529 = dma.done [#allocation5], 128
        $region116: #{tpu_custom_call.1} parent=67 // pred_fallthru
          _
      $region68: #{tpu_custom_call.1} parent=5 // pred_fallthru
        _
      %p2530 = scmp.le.s32.totalorder 2, %s21
      // Predicated region
      $region117: #{tpu_custom_call.1} parent=5 // pred_check
        %p2531 = pneg %p2530
      $region118: #{tpu_custom_call.1} parent=5 // pred_check_branch
        %2533 = sbr.rel (%p2531) target = $region120
      $region119: #{tpu_custom_call.1} parent=5 // pred_region
        %s2534 = ssub.s32 %s21, 2
      $region120: #{tpu_custom_call.1} parent=5 // pred_fallthru
        _
    $region6: #{tpu_custom_call.1} parent=1 // loop_footer
      %s25 = sadd.s32 1, %s21
    $region7: #{tpu_custom_call.1} parent=1 // loop_footer_branch
      %20 = sbr.rel target = $region3
    $region8: #{tpu_custom_call.1} parent=1 // loop_exit
      _
    %2535 = vsyncpa [#allocation4], 1
    %s2536 = scalar_lea.sflag [#allocation4], 1
    %2537 = vsyncpa %s2536, 1
    %2538 = vsyncpa [#allocation7], 1
    %2539 = vsyncpa [#allocation5], 1
    %s2540 = scalar_lea.sflag [#allocation5], 1
    %2541 = vsyncpa %s2540, 1

</llo_original>
